<compile_context>
chip_gen: v7x
topology: tpu7x:2x2x1
jax: 0.10.0
libtpu: 0.0.40
codegen_flags: <defaults>
</compile_context>

<pallas_src>
import functools

import numpy as np
import jax
import jax.numpy as jnp
from jax.experimental import pallas as pl
from jax.experimental.pallas import tpu as pltpu

BN_EPS = 1e-5


def _align3d_kernel(pw1_ref, idx_ref, b1_ref, w2_ref, b2_ref,
                    w3_ref, b3_ref, w4_ref, b4_ref,
                    out_ref, fw2_ref, g_ref, *, T, K):
    phase = pl.program_id(1)
    t = pl.program_id(2)
    nt = pl.num_programs(2)
    row0 = pl.multiple_of(t * T, T)          # first global point row of this tile

    N = pw1_ref.shape[1]
    idx_tile = idx_ref[0, 0]                 # (K*T, 1) int32; row j*T+tt = idx[row0+tt, j]
    col = jax.lax.broadcasted_iota(jnp.int32, (T, N), 1)

    def gather_relu_max(feat_bf16, center_f32, bias):
        """max_j relu( feat[idx[., j]] - center + bias ), via K one-hot MXU gathers."""
        acc = None
        for j in range(K):
            nb = idx_tile[j * T:(j + 1) * T]                        # (T, 1)
            onehot = (col == nb).astype(jnp.bfloat16)               # (T, N); exact in bf16
            gathered = jnp.dot(onehot, feat_bf16,
                               preferred_element_type=jnp.float32)  # (T, Cout) f32
            h = jnp.maximum(gathered - center_f32 + bias, 0.0)
            acc = h if acc is None else jnp.maximum(acc, h)
        return acc

    # ---- phase 0: edge-conv1 (3->64 folded into PW1) + max over k, then fold the
    #      conv2 weights in and cache FW2 = f1 @ W2 for this tile's rows. ----
    @pl.when(phase == 0)
    def _stage1():
        feat = pw1_ref[0].astype(jnp.bfloat16)                              # (N, 64)
        center = pw1_ref[0, pl.ds(row0, T), :].astype(jnp.bfloat16).astype(jnp.float32)
        f1_tile = gather_relu_max(feat, center, b1_ref[...])                # (T, 64)
        fw2_ref[pl.ds(row0, T), :] = jnp.dot(
            f1_tile, w2_ref[...], preferred_element_type=jnp.float32)       # (T, 128)

    # ---- phase 1: edge-conv2 + max over k + running global max; head on last tile ----
    @pl.when(phase == 1)
    def _stage2():
        @pl.when(t == 0)
        def _init():
            # h2 is post-ReLU (>= 0), so zero-init is equivalent to -inf.
            g_ref[...] = jnp.zeros_like(g_ref)

        feat = fw2_ref[...].astype(jnp.bfloat16)                            # (N, 128)
        center = fw2_ref[pl.ds(row0, T), :].astype(jnp.bfloat16).astype(jnp.float32)
        h2_tile = gather_relu_max(feat, center, b2_ref[...])                # (T, 128)
        g_ref[...] = jnp.maximum(g_ref[...],
                                 jnp.max(h2_tile, axis=0, keepdims=True))   # (1, 128)

        @pl.when(t == nt - 1)
        def _head():
            g = g_ref[...]                                                  # (1, 128)
            h3 = jnp.maximum(
                jnp.dot(g, w3_ref[...], preferred_element_type=jnp.float32)
                + b3_ref[...], 0.0)                                         # (1, 64)
            h4 = jnp.dot(h3, w4_ref[...],
                         preferred_element_type=jnp.float32) + b4_ref[...]  # (1, 128) padded
            lane = jax.lax.broadcasted_iota(jnp.int32, h4.shape, 1)
            eye_flat = jnp.where((lane % 4 == 0) & (lane < 9), 1.0, 0.0)    # flattened eye(3)
            out_ref[0] = h4 + eye_flat


def _fold_bn(W, b, gamma, beta, mean, var):
    # y = BN_eval(x @ W.T + b)  ==  x @ (W.T * s) + (s * (b - mean) + beta)
    s = gamma / jnp.sqrt(var + BN_EPS)
    We = (W.T * s[None, :]).astype(jnp.float32)
    be = (s * (b - mean) + beta)[None, :].astype(jnp.float32)
    return We, be


def _choose_tile(N):
    """Largest sublane-aligned divisor of N, capped so per-tile buffers stay small."""
    for cand in range(min(N, 256), 0, -1):
        if N % cand == 0 and (cand % 8 == 0 or cand == N):
            return cand
    return N


def align3d_forward(x, idx, params, tile_t=None):
    """x: (B, 3, N) float32 (PyTorch NCW); idx: (B, N, k) int32. Returns (B, 3, 3)."""
    B, C, N = x.shape
    K = idx.shape[-1]

    T = _choose_tile(N) if tile_t is None else tile_t
    assert N % T == 0, "point count must be divisible by the query tile"
    NT = N // T

    P = jnp.transpose(x, (0, 2, 1)).astype(jnp.float32)            # (B, N, 3)

    W1e, b1e = _fold_bn(params['conv1_w'], params['conv1_b'],
                        params['bn1_g'], params['bn1_b'], params['bn1_m'], params['bn1_v'])
    W2e, b2e = _fold_bn(params['conv2_w'], params['conv2_b'],
                        params['bn2_g'], params['bn2_b'], params['bn2_m'], params['bn2_v'])
    W3e, b3e = _fold_bn(params['lin1_w'], params['lin1_b'],
                        params['bn3_g'], params['bn3_b'], params['bn3_m'], params['bn3_v'])
    # Head weights zero-padded to 128 lanes -> lane-dense final store.
    W4p = jnp.pad(params['lin2_w'].T.astype(jnp.float32), ((0, 0), (0, 128 - 9)))
    b4p = jnp.pad(params['lin2_b'].astype(jnp.float32)[None, :], ((0, 0), (0, 128 - 9)))

    # Fold conv1 into the points up front: the kernel only touches lane-dense
    # 64/128-wide operands (the tiny C=3 matmul stays in XLA).
    PW1 = jnp.einsum('bnc,co->bno', P, W1e).astype(jnp.float32)    # (B, N, 64)

    # Per-tile neighbor-major flattening of idx: row j*T + tt of tile t holds
    # idx[b, t*T + tt, j].  (Out-of-range idx produces an all-zero one-hot row,
    # same as the previous kernel.)
    idx_t = (idx.astype(jnp.int32)
             .reshape(B, NT, T, K)
             .transpose(0, 1, 3, 2)
             .reshape(B, NT, K * T, 1))

    const2d = lambda arr: pl.BlockSpec(arr.shape, lambda b, p, t: (0, 0))

    out = pl.pallas_call(
        functools.partial(_align3d_kernel, T=T, K=K),
        out_shape=jax.ShapeDtypeStruct((B, 1, 128), jnp.float32),
        grid=(B, 2, NT),
        in_specs=[
            pl.BlockSpec((1, N, 64), lambda b, p, t: (b, 0, 0)),            # PW1
            pl.BlockSpec((1, 1, K * T, 1), lambda b, p, t: (b, t, 0, 0)),   # idx tile
            const2d(b1e), const2d(W2e), const2d(b2e),
            const2d(W3e), const2d(b3e), const2d(W4p), const2d(b4p),
        ],
        out_specs=pl.BlockSpec((1, 1, 128), lambda b, p, t: (b, 0, 0)),
        scratch_shapes=[
            pltpu.VMEM((N, 128), jnp.float32),   # FW2 = f1 @ W2 cache (persistent per batch)
            pltpu.VMEM((1, 128), jnp.float32),   # running global max
        ],
        compiler_params=pltpu.CompilerParams(
            dimension_semantics=("parallel", "arbitrary", "arbitrary"),
            vmem_limit_bytes=64 * 1024 * 1024,
        ),
    )(PW1, idx_t, b1e, W2e, b2e, W3e, b3e, W4p, b4p)

    return out[:, 0, :9].reshape(B, 3, 3)


def ref_forward(x, idx, p):
    """Pure-JAX reference mirroring the PyTorch forward (eval-mode BN)."""
    hp = jax.lax.Precision.HIGHEST
    P0 = jnp.transpose(x, (0, 2, 1))                               # (B, N, C)

    def edges(P, ii):
        nb = jax.vmap(lambda pts, i: pts[i])(P, ii)                # (B, N, K, F)
        return nb - P[:, :, None, :]

    def bn(z, g, b, m, v):
        return (z - m) / jnp.sqrt(v + BN_EPS) * g + b

    e1 = edges(P0, idx)
    z1 = jnp.einsum('bnkc,oc->bnko', e1, p['conv1_w'], precision=hp) + p['conv1_b']
    h1 = jax.nn.relu(bn(z1, p['bn1_g'], p['bn1_b'], p['bn1_m'], p['bn1_v']))
    f1 = jnp.max(h1, axis=2)                                       # (B, N, 64)
    e2 = edges(f1, idx)
    z2 = jnp.einsum('bnkc,oc->bnko', e2, p['conv2_w'], precision=hp) + p['conv2_b']
    h2 = jax.nn.relu(bn(z2, p['bn2_g'], p['bn2_b'], p['bn2_m'], p['bn2_v']))
    f2 = jnp.max(h2, axis=(1, 2))                                  # (B, 128)
    z3 = jnp.einsum('bi,oi->bo', f2, p['lin1_w'], precision=hp) + p['lin1_b']
    h3 = jax.nn.relu(bn(z3, p['bn3_g'], p['bn3_b'], p['bn3_m'], p['bn3_v']))
    z4 = jnp.einsum('bi,oi->bo', h3, p['lin2_w'], precision=hp) + p['lin2_b']
    out = z4 + jnp.eye(3, dtype=z4.dtype).reshape(1, 9)
    return out.reshape(-1, 3, 3)


if __name__ == "__main__":
    B, C, N, K = 2, 3, 16, 8
    key = jax.random.PRNGKey(0)
    ks = jax.random.split(key, 24)

    def nrm(k, shape, scale=0.1):
        return scale * jax.random.normal(k, shape, dtype=jnp.float32)

    params = {
        'conv1_w': nrm(ks[0], (64, 3)),   'conv1_b': nrm(ks[1], (64,)),
        'bn1_g': 1.0 + nrm(ks[2], (64,)), 'bn1_b': nrm(ks[3], (64,)),
        'bn1_m': nrm(ks[4], (64,)),       'bn1_v': 1.0 + jnp.abs(nrm(ks[5], (64,))),
        'conv2_w': nrm(ks[6], (128, 64)), 'conv2_b': nrm(ks[7], (128,)),
        'bn2_g': 1.0 + nrm(ks[8], (128,)), 'bn2_b': nrm(ks[9], (128,)),
        'bn2_m': nrm(ks[10], (128,)),     'bn2_v': 1.0 + jnp.abs(nrm(ks[11], (128,))),
        'lin1_w': nrm(ks[12], (64, 128)), 'lin1_b': nrm(ks[13], (64,)),
        'bn3_g': 1.0 + nrm(ks[14], (64,)), 'bn3_b': nrm(ks[15], (64,)),
        'bn3_m': nrm(ks[16], (64,)),      'bn3_v': 1.0 + jnp.abs(nrm(ks[17], (64,))),
        'lin2_w': nrm(ks[18], (9, 64)),   'lin2_b': nrm(ks[19], (9,)),
    }

    x = jax.random.normal(ks[20], (B, C, N), dtype=jnp.float32)            # (B, 3, N) NCW
    idx = jax.random.randint(ks[21], (B, N, K), 0, N, dtype=jnp.int32)     # (B, N, k)

    # tile_t=8 exercises the multi-tile (NT=2) path even at this toy N.
    out = jax.block_until_ready(align3d_forward(x, idx, params, tile_t=8))
    assert out.shape == (B, 3, 3)

    ref = ref_forward(x, idx, params)
    # Tolerance accounts for bf16 MXU operands in the gather matmuls.
    np.testing.assert_allclose(np.asarray(out), np.asarray(ref), rtol=2e-3, atol=1e-2)

    print("KERNEL_OK")
</pallas_src>

<mosaic_0001>
module attributes {stable_mosaic.version = 11 : i64} {
  func.func @_align3d_kernel(%arg0: i32, %arg1: i32, %arg2: i32, %arg3: memref<1x16x64xf32, #tpu.memory_space<vmem>>, %arg4: memref<1x1x64x1xi32, #tpu.memory_space<vmem>>, %arg5: memref<1x64xf32, #tpu.memory_space<vmem>>, %arg6: memref<64x128xf32, #tpu.memory_space<vmem>>, %arg7: memref<1x128xf32, #tpu.memory_space<vmem>>, %arg8: memref<128x64xf32, #tpu.memory_space<vmem>>, %arg9: memref<1x64xf32, #tpu.memory_space<vmem>>, %arg10: memref<64x128xf32, #tpu.memory_space<vmem>>, %arg11: memref<1x128xf32, #tpu.memory_space<vmem>>, %arg12: memref<1x1x128xf32, #tpu.memory_space<vmem>>, %arg13: memref<16x128xf32, #tpu.memory_space<vmem>>, %arg14: memref<1x128xf32, #tpu.memory_space<vmem>>) attributes {dimension_semantics = [#tpu.dimension_semantics<parallel>, #tpu.dimension_semantics<arbitrary>, #tpu.dimension_semantics<arbitrary>], iteration_bounds = array<i64: 2, 2, 2>, scalar_prefetch = 0 : i64, scratch_operands = 2 : i64, tpu.core_type = #tpu.core_type<tc>, window_params = [{transform_indices = @transform_0, window_bounds = array<i64: 1, 16, 64>}, {transform_indices = @transform_1, window_bounds = array<i64: 1, 1, 64, 1>}, {pipeline_mode = #tpu.pipeline_mode<synchronous>, transform_indices = @transform_2, window_bounds = array<i64: 1, 64>}, {pipeline_mode = #tpu.pipeline_mode<synchronous>, transform_indices = @transform_3, window_bounds = array<i64: 64, 128>}, {pipeline_mode = #tpu.pipeline_mode<synchronous>, transform_indices = @transform_4, window_bounds = array<i64: 1, 128>}, {pipeline_mode = #tpu.pipeline_mode<synchronous>, transform_indices = @transform_5, window_bounds = array<i64: 128, 64>}, {pipeline_mode = #tpu.pipeline_mode<synchronous>, transform_indices = @transform_6, window_bounds = array<i64: 1, 64>}, {pipeline_mode = #tpu.pipeline_mode<synchronous>, transform_indices = @transform_7, window_bounds = array<i64: 64, 128>}, {pipeline_mode = #tpu.pipeline_mode<synchronous>, transform_indices = @transform_8, window_bounds = array<i64: 1, 128>}, {transform_indices = @transform_9, window_bounds = array<i64: 1, 1, 128>}]} {
    %c8_i32 = arith.constant 8 : i32
    %0 = arith.muli %arg2, %c8_i32 : i32
    %1 = tpu.assume_multiple %0, 8 : i32
    %c0 = arith.constant 0 : index
    %c0_0 = arith.constant 0 : index
    %c0_1 = arith.constant 0 : index
    %c0_2 = arith.constant 0 : index
    %2 = vector.load %arg4[%c0, %c0_0, %c0_1, %c0_2] : memref<1x1x64x1xi32, #tpu.memory_space<vmem>>, vector<1x1x64x1xi32>
    %3 = vector.shape_cast %2 : vector<1x1x64x1xi32> to vector<64x1xi32>
    %4 = tpu.iota {dimensions = array<i32: 1>} : vector<8x16xi32>
    %c0_i32 = arith.constant 0 : i32
    %5 = arith.cmpi eq, %arg1, %c0_i32 : i32
    %6 = arith.extui %5 : i1 to i32
    %c0_i32_3 = arith.constant 0 : i32
    %7 = arith.cmpi ne, %6, %c0_i32_3 : i32
    scf.if %7 {
      %c0_5 = arith.constant 0 : index
      %c0_6 = arith.constant 0 : index
      %c0_7 = arith.constant 0 : index
      %11 = vector.load %arg3[%c0_5, %c0_6, %c0_7] : memref<1x16x64xf32, #tpu.memory_space<vmem>>, vector<1x16x64xf32>
      %12 = vector.shape_cast %11 : vector<1x16x64xf32> to vector<16x64xf32>
      %13 = arith.truncf %12 : vector<16x64xf32> to vector<16x64xbf16>
      %c0_8 = arith.constant 0 : index
      %14 = arith.index_cast %1 : i32 to index
      %c0_9 = arith.constant 0 : index
      %15 = vector.load %arg3[%c0_8, %14, %c0_9] : memref<1x16x64xf32, #tpu.memory_space<vmem>>, vector<1x8x64xf32>
      %16 = vector.shape_cast %15 : vector<1x8x64xf32> to vector<8x64xf32>
      %17 = arith.truncf %16 : vector<8x64xf32> to vector<8x64xbf16>
      %18 = arith.extf %17 : vector<8x64xbf16> to vector<8x64xf32>
      %c0_10 = arith.constant 0 : index
      %c0_11 = arith.constant 0 : index
      %19 = vector.load %arg5[%c0_10, %c0_11] : memref<1x64xf32, #tpu.memory_space<vmem>>, vector<1x64xf32>
      %20 = vector.extract_strided_slice %3 {offsets = [0, 0], sizes = [8, 1], strides = [1, 1]} : vector<64x1xi32> to vector<8x1xi32>
      %21 = vector.broadcast %20 : vector<8x1xi32> to vector<8x16xi32>
      %22 = arith.cmpi eq, %4, %21 : vector<8x16xi32>
      %23 = arith.extui %22 : vector<8x16xi1> to vector<8x16xi32>
      %24 = arith.sitofp %23 : vector<8x16xi32> to vector<8x16xf32>
      %25 = arith.truncf %24 : vector<8x16xf32> to vector<8x16xbf16>
      %cst = arith.constant dense<0.000000e+00> : vector<8x64xf32>
      %26 = tpu.matmul %25, %13, %cst {dimension_numbers = #tpu.dot_dimension_numbers<[1], [0], [0], [1], [0, 0, 1, 1], [], []>} : vector<8x16xbf16>, vector<16x64xbf16>, vector<8x64xf32> -> vector<8x64xf32>
      %27 = arith.subf %26, %18 : vector<8x64xf32>
      %28 = vector.broadcast %19 : vector<1x64xf32> to vector<8x64xf32>
      %29 = arith.addf %27, %28 : vector<8x64xf32>
      %cst_12 = arith.constant 0.000000e+00 : f32
      %30 = vector.broadcast %cst_12 : f32 to vector<8x64xf32>
      %31 = arith.maximumf %29, %30 : vector<8x64xf32>
      %32 = vector.extract_strided_slice %3 {offsets = [8, 0], sizes = [8, 1], strides = [1, 1]} : vector<64x1xi32> to vector<8x1xi32>
      %33 = vector.broadcast %32 : vector<8x1xi32> to vector<8x16xi32>
      %34 = arith.cmpi eq, %4, %33 : vector<8x16xi32>
      %35 = arith.extui %34 : vector<8x16xi1> to vector<8x16xi32>
      %36 = arith.sitofp %35 : vector<8x16xi32> to vector<8x16xf32>
      %37 = arith.truncf %36 : vector<8x16xf32> to vector<8x16xbf16>
      %cst_13 = arith.constant dense<0.000000e+00> : vector<8x64xf32>
      %38 = tpu.matmul %37, %13, %cst_13 {dimension_numbers = #tpu.dot_dimension_numbers<[1], [0], [0], [1], [0, 0, 1, 1], [], []>} : vector<8x16xbf16>, vector<16x64xbf16>, vector<8x64xf32> -> vector<8x64xf32>
      %39 = arith.subf %38, %18 : vector<8x64xf32>
      %40 = vector.broadcast %19 : vector<1x64xf32> to vector<8x64xf32>
      %41 = arith.addf %39, %40 : vector<8x64xf32>
      %cst_14 = arith.constant 0.000000e+00 : f32
      %42 = vector.broadcast %cst_14 : f32 to vector<8x64xf32>
      %43 = arith.maximumf %41, %42 : vector<8x64xf32>
      %44 = arith.maximumf %31, %43 : vector<8x64xf32>
      %45 = vector.extract_strided_slice %3 {offsets = [16, 0], sizes = [8, 1], strides = [1, 1]} : vector<64x1xi32> to vector<8x1xi32>
      %46 = vector.broadcast %45 : vector<8x1xi32> to vector<8x16xi32>
      %47 = arith.cmpi eq, %4, %46 : vector<8x16xi32>
      %48 = arith.extui %47 : vector<8x16xi1> to vector<8x16xi32>
      %49 = arith.sitofp %48 : vector<8x16xi32> to vector<8x16xf32>
      %50 = arith.truncf %49 : vector<8x16xf32> to vector<8x16xbf16>
      %cst_15 = arith.constant dense<0.000000e+00> : vector<8x64xf32>
      %51 = tpu.matmul %50, %13, %cst_15 {dimension_numbers = #tpu.dot_dimension_numbers<[1], [0], [0], [1], [0, 0, 1, 1], [], []>} : vector<8x16xbf16>, vector<16x64xbf16>, vector<8x64xf32> -> vector<8x64xf32>
      %52 = arith.subf %51, %18 : vector<8x64xf32>
      %53 = vector.broadcast %19 : vector<1x64xf32> to vector<8x64xf32>
      %54 = arith.addf %52, %53 : vector<8x64xf32>
      %cst_16 = arith.constant 0.000000e+00 : f32
      %55 = vector.broadcast %cst_16 : f32 to vector<8x64xf32>
      %56 = arith.maximumf %54, %55 : vector<8x64xf32>
      %57 = arith.maximumf %44, %56 : vector<8x64xf32>
      %58 = vector.extract_strided_slice %3 {offsets = [24, 0], sizes = [8, 1], strides = [1, 1]} : vector<64x1xi32> to vector<8x1xi32>
      %59 = vector.broadcast %58 : vector<8x1xi32> to vector<8x16xi32>
      %60 = arith.cmpi eq, %4, %59 : vector<8x16xi32>
      %61 = arith.extui %60 : vector<8x16xi1> to vector<8x16xi32>
      %62 = arith.sitofp %61 : vector<8x16xi32> to vector<8x16xf32>
      %63 = arith.truncf %62 : vector<8x16xf32> to vector<8x16xbf16>
      %cst_17 = arith.constant dense<0.000000e+00> : vector<8x64xf32>
      %64 = tpu.matmul %63, %13, %cst_17 {dimension_numbers = #tpu.dot_dimension_numbers<[1], [0], [0], [1], [0, 0, 1, 1], [], []>} : vector<8x16xbf16>, vector<16x64xbf16>, vector<8x64xf32> -> vector<8x64xf32>
      %65 = arith.subf %64, %18 : vector<8x64xf32>
      %66 = vector.broadcast %19 : vector<1x64xf32> to vector<8x64xf32>
      %67 = arith.addf %65, %66 : vector<8x64xf32>
      %cst_18 = arith.constant 0.000000e+00 : f32
      %68 = vector.broadcast %cst_18 : f32 to vector<8x64xf32>
      %69 = arith.maximumf %67, %68 : vector<8x64xf32>
      %70 = arith.maximumf %57, %69 : vector<8x64xf32>
      %71 = vector.extract_strided_slice %3 {offsets = [32, 0], sizes = [8, 1], strides = [1, 1]} : vector<64x1xi32> to vector<8x1xi32>
      %72 = vector.broadcast %71 : vector<8x1xi32> to vector<8x16xi32>
      %73 = arith.cmpi eq, %4, %72 : vector<8x16xi32>
      %74 = arith.extui %73 : vector<8x16xi1> to vector<8x16xi32>
      %75 = arith.sitofp %74 : vector<8x16xi32> to vector<8x16xf32>
      %76 = arith.truncf %75 : vector<8x16xf32> to vector<8x16xbf16>
      %cst_19 = arith.constant dense<0.000000e+00> : vector<8x64xf32>
      %77 = tpu.matmul %76, %13, %cst_19 {dimension_numbers = #tpu.dot_dimension_numbers<[1], [0], [0], [1], [0, 0, 1, 1], [], []>} : vector<8x16xbf16>, vector<16x64xbf16>, vector<8x64xf32> -> vector<8x64xf32>
      %78 = arith.subf %77, %18 : vector<8x64xf32>
      %79 = vector.broadcast %19 : vector<1x64xf32> to vector<8x64xf32>
      %80 = arith.addf %78, %79 : vector<8x64xf32>
      %cst_20 = arith.constant 0.000000e+00 : f32
      %81 = vector.broadcast %cst_20 : f32 to vector<8x64xf32>
      %82 = arith.maximumf %80, %81 : vector<8x64xf32>
      %83 = arith.maximumf %70, %82 : vector<8x64xf32>
      %84 = vector.extract_strided_slice %3 {offsets = [40, 0], sizes = [8, 1], strides = [1, 1]} : vector<64x1xi32> to vector<8x1xi32>
      %85 = vector.broadcast %84 : vector<8x1xi32> to vector<8x16xi32>
      %86 = arith.cmpi eq, %4, %85 : vector<8x16xi32>
      %87 = arith.extui %86 : vector<8x16xi1> to vector<8x16xi32>
      %88 = arith.sitofp %87 : vector<8x16xi32> to vector<8x16xf32>
      %89 = arith.truncf %88 : vector<8x16xf32> to vector<8x16xbf16>
      %cst_21 = arith.constant dense<0.000000e+00> : vector<8x64xf32>
      %90 = tpu.matmul %89, %13, %cst_21 {dimension_numbers = #tpu.dot_dimension_numbers<[1], [0], [0], [1], [0, 0, 1, 1], [], []>} : vector<8x16xbf16>, vector<16x64xbf16>, vector<8x64xf32> -> vector<8x64xf32>
      %91 = arith.subf %90, %18 : vector<8x64xf32>
      %92 = vector.broadcast %19 : vector<1x64xf32> to vector<8x64xf32>
      %93 = arith.addf %91, %92 : vector<8x64xf32>
      %cst_22 = arith.constant 0.000000e+00 : f32
      %94 = vector.broadcast %cst_22 : f32 to vector<8x64xf32>
      %95 = arith.maximumf %93, %94 : vector<8x64xf32>
      %96 = arith.maximumf %83, %95 : vector<8x64xf32>
      %97 = vector.extract_strided_slice %3 {offsets = [48, 0], sizes = [8, 1], strides = [1, 1]} : vector<64x1xi32> to vector<8x1xi32>
      %98 = vector.broadcast %97 : vector<8x1xi32> to vector<8x16xi32>
      %99 = arith.cmpi eq, %4, %98 : vector<8x16xi32>
      %100 = arith.extui %99 : vector<8x16xi1> to vector<8x16xi32>
      %101 = arith.sitofp %100 : vector<8x16xi32> to vector<8x16xf32>
      %102 = arith.truncf %101 : vector<8x16xf32> to vector<8x16xbf16>
      %cst_23 = arith.constant dense<0.000000e+00> : vector<8x64xf32>
      %103 = tpu.matmul %102, %13, %cst_23 {dimension_numbers = #tpu.dot_dimension_numbers<[1], [0], [0], [1], [0, 0, 1, 1], [], []>} : vector<8x16xbf16>, vector<16x64xbf16>, vector<8x64xf32> -> vector<8x64xf32>
      %104 = arith.subf %103, %18 : vector<8x64xf32>
      %105 = vector.broadcast %19 : vector<1x64xf32> to vector<8x64xf32>
      %106 = arith.addf %104, %105 : vector<8x64xf32>
      %cst_24 = arith.constant 0.000000e+00 : f32
      %107 = vector.broadcast %cst_24 : f32 to vector<8x64xf32>
      %108 = arith.maximumf %106, %107 : vector<8x64xf32>
      %109 = arith.maximumf %96, %108 : vector<8x64xf32>
      %110 = vector.extract_strided_slice %3 {offsets = [56, 0], sizes = [8, 1], strides = [1, 1]} : vector<64x1xi32> to vector<8x1xi32>
      %111 = vector.broadcast %110 : vector<8x1xi32> to vector<8x16xi32>
      %112 = arith.cmpi eq, %4, %111 : vector<8x16xi32>
      %113 = arith.extui %112 : vector<8x16xi1> to vector<8x16xi32>
      %114 = arith.sitofp %113 : vector<8x16xi32> to vector<8x16xf32>
      %115 = arith.truncf %114 : vector<8x16xf32> to vector<8x16xbf16>
      %cst_25 = arith.constant dense<0.000000e+00> : vector<8x64xf32>
      %116 = tpu.matmul %115, %13, %cst_25 {dimension_numbers = #tpu.dot_dimension_numbers<[1], [0], [0], [1], [0, 0, 1, 1], [], []>} : vector<8x16xbf16>, vector<16x64xbf16>, vector<8x64xf32> -> vector<8x64xf32>
      %117 = arith.subf %116, %18 : vector<8x64xf32>
      %118 = vector.broadcast %19 : vector<1x64xf32> to vector<8x64xf32>
      %119 = arith.addf %117, %118 : vector<8x64xf32>
      %cst_26 = arith.constant 0.000000e+00 : f32
      %120 = vector.broadcast %cst_26 : f32 to vector<8x64xf32>
      %121 = arith.maximumf %119, %120 : vector<8x64xf32>
      %122 = arith.maximumf %109, %121 : vector<8x64xf32>
      %c0_27 = arith.constant 0 : index
      %c0_28 = arith.constant 0 : index
      %123 = vector.load %arg6[%c0_27, %c0_28] : memref<64x128xf32, #tpu.memory_space<vmem>>, vector<64x128xf32>
      %cst_29 = arith.constant dense<0.000000e+00> : vector<8x128xf32>
      %124 = tpu.matmul %122, %123, %cst_29 {dimension_numbers = #tpu.dot_dimension_numbers<[1], [0], [0], [1], [0, 0, 1, 1], [], []>} : vector<8x64xf32>, vector<64x128xf32>, vector<8x128xf32> -> vector<8x128xf32>
      %125 = arith.index_cast %1 : i32 to index
      %c0_30 = arith.constant 0 : index
      %126 = vector.load %arg13[%125, %c0_30] : memref<16x128xf32, #tpu.memory_space<vmem>>, vector<8x128xf32>
      tpu.vector_store %arg13[%125, %c0_30], %124 {strides = array<i32>} : memref<16x128xf32, #tpu.memory_space<vmem>>, vector<8x128xf32>,
    } else {
    }
    %c1_i32 = arith.constant 1 : i32
    %8 = arith.cmpi eq, %arg1, %c1_i32 : i32
    %9 = arith.extui %8 : i1 to i32
    %c0_i32_4 = arith.constant 0 : i32
    %10 = arith.cmpi ne, %9, %c0_i32_4 : i32
    scf.if %10 {
      %c0_i32_5 = arith.constant 0 : i32
      %11 = arith.cmpi eq, %arg2, %c0_i32_5 : i32
      %12 = arith.extui %11 : i1 to i32
      %c0_i32_6 = arith.constant 0 : i32
      %13 = arith.cmpi ne, %12, %c0_i32_6 : i32
      scf.if %13 {
        %cst_34 = arith.constant 0.000000e+00 : f32
        %132 = vector.broadcast %cst_34 : f32 to vector<1x128xf32>
        %c0_35 = arith.constant 0 : index
        %c0_36 = arith.constant 0 : index
        %133 = vector.load %arg14[%c0_35, %c0_36] : memref<1x128xf32, #tpu.memory_space<vmem>>, vector<1x128xf32>
        tpu.vector_store %arg14[%c0_35, %c0_36], %132 {strides = array<i32>} : memref<1x128xf32, #tpu.memory_space<vmem>>, vector<1x128xf32>,
      } else {
      }
      %c0_7 = arith.constant 0 : index
      %c0_8 = arith.constant 0 : index
      %14 = vector.load %arg13[%c0_7, %c0_8] : memref<16x128xf32, #tpu.memory_space<vmem>>, vector<16x128xf32>
      %15 = arith.truncf %14 : vector<16x128xf32> to vector<16x128xbf16>
      %16 = arith.index_cast %1 : i32 to index
      %c0_9 = arith.constant 0 : index
      %17 = vector.load %arg13[%16, %c0_9] : memref<16x128xf32, #tpu.memory_space<vmem>>, vector<8x128xf32>
      %18 = arith.truncf %17 : vector<8x128xf32> to vector<8x128xbf16>
      %19 = arith.extf %18 : vector<8x128xbf16> to vector<8x128xf32>
      %c0_10 = arith.constant 0 : index
      %c0_11 = arith.constant 0 : index
      %20 = vector.load %arg7[%c0_10, %c0_11] : memref<1x128xf32, #tpu.memory_space<vmem>>, vector<1x128xf32>
      %21 = vector.extract_strided_slice %3 {offsets = [0, 0], sizes = [8, 1], strides = [1, 1]} : vector<64x1xi32> to vector<8x1xi32>
      %22 = vector.broadcast %21 : vector<8x1xi32> to vector<8x16xi32>
      %23 = arith.cmpi eq, %4, %22 : vector<8x16xi32>
      %24 = arith.extui %23 : vector<8x16xi1> to vector<8x16xi32>
      %25 = arith.sitofp %24 : vector<8x16xi32> to vector<8x16xf32>
      %26 = arith.truncf %25 : vector<8x16xf32> to vector<8x16xbf16>
      %cst = arith.constant dense<0.000000e+00> : vector<8x128xf32>
      %27 = tpu.matmul %26, %15, %cst {dimension_numbers = #tpu.dot_dimension_numbers<[1], [0], [0], [1], [0, 0, 1, 1], [], []>} : vector<8x16xbf16>, vector<16x128xbf16>, vector<8x128xf32> -> vector<8x128xf32>
      %28 = arith.subf %27, %19 : vector<8x128xf32>
      %29 = vector.broadcast %20 : vector<1x128xf32> to vector<8x128xf32>
      %30 = arith.addf %28, %29 : vector<8x128xf32>
      %cst_12 = arith.constant 0.000000e+00 : f32
      %31 = vector.broadcast %cst_12 : f32 to vector<8x128xf32>
      %32 = arith.maximumf %30, %31 : vector<8x128xf32>
      %33 = vector.extract_strided_slice %3 {offsets = [8, 0], sizes = [8, 1], strides = [1, 1]} : vector<64x1xi32> to vector<8x1xi32>
      %34 = vector.broadcast %33 : vector<8x1xi32> to vector<8x16xi32>
      %35 = arith.cmpi eq, %4, %34 : vector<8x16xi32>
      %36 = arith.extui %35 : vector<8x16xi1> to vector<8x16xi32>
      %37 = arith.sitofp %36 : vector<8x16xi32> to vector<8x16xf32>
      %38 = arith.truncf %37 : vector<8x16xf32> to vector<8x16xbf16>
      %cst_13 = arith.constant dense<0.000000e+00> : vector<8x128xf32>
      %39 = tpu.matmul %38, %15, %cst_13 {dimension_numbers = #tpu.dot_dimension_numbers<[1], [0], [0], [1], [0, 0, 1, 1], [], []>} : vector<8x16xbf16>, vector<16x128xbf16>, vector<8x128xf32> -> vector<8x128xf32>
      %40 = arith.subf %39, %19 : vector<8x128xf32>
      %41 = vector.broadcast %20 : vector<1x128xf32> to vector<8x128xf32>
      %42 = arith.addf %40, %41 : vector<8x128xf32>
      %cst_14 = arith.constant 0.000000e+00 : f32
      %43 = vector.broadcast %cst_14 : f32 to vector<8x128xf32>
      %44 = arith.maximumf %42, %43 : vector<8x128xf32>
      %45 = arith.maximumf %32, %44 : vector<8x128xf32>
      %46 = vector.extract_strided_slice %3 {offsets = [16, 0], sizes = [8, 1], strides = [1, 1]} : vector<64x1xi32> to vector<8x1xi32>
      %47 = vector.broadcast %46 : vector<8x1xi32> to vector<8x16xi32>
      %48 = arith.cmpi eq, %4, %47 : vector<8x16xi32>
      %49 = arith.extui %48 : vector<8x16xi1> to vector<8x16xi32>
      %50 = arith.sitofp %49 : vector<8x16xi32> to vector<8x16xf32>
      %51 = arith.truncf %50 : vector<8x16xf32> to vector<8x16xbf16>
      %cst_15 = arith.constant dense<0.000000e+00> : vector<8x128xf32>
      %52 = tpu.matmul %51, %15, %cst_15 {dimension_numbers = #tpu.dot_dimension_numbers<[1], [0], [0], [1], [0, 0, 1, 1], [], []>} : vector<8x16xbf16>, vector<16x128xbf16>, vector<8x128xf32> -> vector<8x128xf32>
      %53 = arith.subf %52, %19 : vector<8x128xf32>
      %54 = vector.broadcast %20 : vector<1x128xf32> to vector<8x128xf32>
      %55 = arith.addf %53, %54 : vector<8x128xf32>
      %cst_16 = arith.constant 0.000000e+00 : f32
      %56 = vector.broadcast %cst_16 : f32 to vector<8x128xf32>
      %57 = arith.maximumf %55, %56 : vector<8x128xf32>
      %58 = arith.maximumf %45, %57 : vector<8x128xf32>
      %59 = vector.extract_strided_slice %3 {offsets = [24, 0], sizes = [8, 1], strides = [1, 1]} : vector<64x1xi32> to vector<8x1xi32>
      %60 = vector.broadcast %59 : vector<8x1xi32> to vector<8x16xi32>
      %61 = arith.cmpi eq, %4, %60 : vector<8x16xi32>
      %62 = arith.extui %61 : vector<8x16xi1> to vector<8x16xi32>
      %63 = arith.sitofp %62 : vector<8x16xi32> to vector<8x16xf32>
      %64 = arith.truncf %63 : vector<8x16xf32> to vector<8x16xbf16>
      %cst_17 = arith.constant dense<0.000000e+00> : vector<8x128xf32>
      %65 = tpu.matmul %64, %15, %cst_17 {dimension_numbers = #tpu.dot_dimension_numbers<[1], [0], [0], [1], [0, 0, 1, 1], [], []>} : vector<8x16xbf16>, vector<16x128xbf16>, vector<8x128xf32> -> vector<8x128xf32>
      %66 = arith.subf %65, %19 : vector<8x128xf32>
      %67 = vector.broadcast %20 : vector<1x128xf32> to vector<8x128xf32>
      %68 = arith.addf %66, %67 : vector<8x128xf32>
      %cst_18 = arith.constant 0.000000e+00 : f32
      %69 = vector.broadcast %cst_18 : f32 to vector<8x128xf32>
      %70 = arith.maximumf %68, %69 : vector<8x128xf32>
      %71 = arith.maximumf %58, %70 : vector<8x128xf32>
      %72 = vector.extract_strided_slice %3 {offsets = [32, 0], sizes = [8, 1], strides = [1, 1]} : vector<64x1xi32> to vector<8x1xi32>
      %73 = vector.broadcast %72 : vector<8x1xi32> to vector<8x16xi32>
      %74 = arith.cmpi eq, %4, %73 : vector<8x16xi32>
      %75 = arith.extui %74 : vector<8x16xi1> to vector<8x16xi32>
      %76 = arith.sitofp %75 : vector<8x16xi32> to vector<8x16xf32>
      %77 = arith.truncf %76 : vector<8x16xf32> to vector<8x16xbf16>
      %cst_19 = arith.constant dense<0.000000e+00> : vector<8x128xf32>
      %78 = tpu.matmul %77, %15, %cst_19 {dimension_numbers = #tpu.dot_dimension_numbers<[1], [0], [0], [1], [0, 0, 1, 1], [], []>} : vector<8x16xbf16>, vector<16x128xbf16>, vector<8x128xf32> -> vector<8x128xf32>
      %79 = arith.subf %78, %19 : vector<8x128xf32>
      %80 = vector.broadcast %20 : vector<1x128xf32> to vector<8x128xf32>
      %81 = arith.addf %79, %80 : vector<8x128xf32>
      %cst_20 = arith.constant 0.000000e+00 : f32
      %82 = vector.broadcast %cst_20 : f32 to vector<8x128xf32>
      %83 = arith.maximumf %81, %82 : vector<8x128xf32>
      %84 = arith.maximumf %71, %83 : vector<8x128xf32>
      %85 = vector.extract_strided_slice %3 {offsets = [40, 0], sizes = [8, 1], strides = [1, 1]} : vector<64x1xi32> to vector<8x1xi32>
      %86 = vector.broadcast %85 : vector<8x1xi32> to vector<8x16xi32>
      %87 = arith.cmpi eq, %4, %86 : vector<8x16xi32>
      %88 = arith.extui %87 : vector<8x16xi1> to vector<8x16xi32>
      %89 = arith.sitofp %88 : vector<8x16xi32> to vector<8x16xf32>
      %90 = arith.truncf %89 : vector<8x16xf32> to vector<8x16xbf16>
      %cst_21 = arith.constant dense<0.000000e+00> : vector<8x128xf32>
      %91 = tpu.matmul %90, %15, %cst_21 {dimension_numbers = #tpu.dot_dimension_numbers<[1], [0], [0], [1], [0, 0, 1, 1], [], []>} : vector<8x16xbf16>, vector<16x128xbf16>, vector<8x128xf32> -> vector<8x128xf32>
      %92 = arith.subf %91, %19 : vector<8x128xf32>
      %93 = vector.broadcast %20 : vector<1x128xf32> to vector<8x128xf32>
      %94 = arith.addf %92, %93 : vector<8x128xf32>
      %cst_22 = arith.constant 0.000000e+00 : f32
      %95 = vector.broadcast %cst_22 : f32 to vector<8x128xf32>
      %96 = arith.maximumf %94, %95 : vector<8x128xf32>
      %97 = arith.maximumf %84, %96 : vector<8x128xf32>
      %98 = vector.extract_strided_slice %3 {offsets = [48, 0], sizes = [8, 1], strides = [1, 1]} : vector<64x1xi32> to vector<8x1xi32>
      %99 = vector.broadcast %98 : vector<8x1xi32> to vector<8x16xi32>
      %100 = arith.cmpi eq, %4, %99 : vector<8x16xi32>
      %101 = arith.extui %100 : vector<8x16xi1> to vector<8x16xi32>
      %102 = arith.sitofp %101 : vector<8x16xi32> to vector<8x16xf32>
      %103 = arith.truncf %102 : vector<8x16xf32> to vector<8x16xbf16>
      %cst_23 = arith.constant dense<0.000000e+00> : vector<8x128xf32>
      %104 = tpu.matmul %103, %15, %cst_23 {dimension_numbers = #tpu.dot_dimension_numbers<[1], [0], [0], [1], [0, 0, 1, 1], [], []>} : vector<8x16xbf16>, vector<16x128xbf16>, vector<8x128xf32> -> vector<8x128xf32>
      %105 = arith.subf %104, %19 : vector<8x128xf32>
      %106 = vector.broadcast %20 : vector<1x128xf32> to vector<8x128xf32>
      %107 = arith.addf %105, %106 : vector<8x128xf32>
      %cst_24 = arith.constant 0.000000e+00 : f32
      %108 = vector.broadcast %cst_24 : f32 to vector<8x128xf32>
      %109 = arith.maximumf %107, %108 : vector<8x128xf32>
      %110 = arith.maximumf %97, %109 : vector<8x128xf32>
      %111 = vector.extract_strided_slice %3 {offsets = [56, 0], sizes = [8, 1], strides = [1, 1]} : vector<64x1xi32> to vector<8x1xi32>
      %112 = vector.broadcast %111 : vector<8x1xi32> to vector<8x16xi32>
      %113 = arith.cmpi eq, %4, %112 : vector<8x16xi32>
      %114 = arith.extui %113 : vector<8x16xi1> to vector<8x16xi32>
      %115 = arith.sitofp %114 : vector<8x16xi32> to vector<8x16xf32>
      %116 = arith.truncf %115 : vector<8x16xf32> to vector<8x16xbf16>
      %cst_25 = arith.constant dense<0.000000e+00> : vector<8x128xf32>
      %117 = tpu.matmul %116, %15, %cst_25 {dimension_numbers = #tpu.dot_dimension_numbers<[1], [0], [0], [1], [0, 0, 1, 1], [], []>} : vector<8x16xbf16>, vector<16x128xbf16>, vector<8x128xf32> -> vector<8x128xf32>
      %118 = arith.subf %117, %19 : vector<8x128xf32>
      %119 = vector.broadcast %20 : vector<1x128xf32> to vector<8x128xf32>
      %120 = arith.addf %118, %119 : vector<8x128xf32>
      %cst_26 = arith.constant 0.000000e+00 : f32
      %121 = vector.broadcast %cst_26 : f32 to vector<8x128xf32>
      %122 = arith.maximumf %120, %121 : vector<8x128xf32>
      %123 = arith.maximumf %110, %122 : vector<8x128xf32>
      %c0_27 = arith.constant 0 : index
      %c0_28 = arith.constant 0 : index
      %124 = vector.load %arg14[%c0_27, %c0_28] : memref<1x128xf32, #tpu.memory_space<vmem>>, vector<1x128xf32>
      %cst_29 = arith.constant dense<0xFF800000> : vector<128xf32>
      %125 = vector.multi_reduction <maximumf>, %123, %cst_29 [0] : vector<8x128xf32> to vector<128xf32>
      %126 = vector.shape_cast %125 : vector<128xf32> to vector<1x128xf32>
      %127 = arith.maximumf %124, %126 : vector<1x128xf32>
      %c0_30 = arith.constant 0 : index
      %c0_31 = arith.constant 0 : index
      %128 = vector.load %arg14[%c0_30, %c0_31] : memref<1x128xf32, #tpu.memory_space<vmem>>, vector<1x128xf32>
      tpu.vector_store %arg14[%c0_30, %c0_31], %127 {strides = array<i32>} : memref<1x128xf32, #tpu.memory_space<vmem>>, vector<1x128xf32>,
      %c1_i32_32 = arith.constant 1 : i32
      %129 = arith.cmpi eq, %arg2, %c1_i32_32 : i32
      %130 = arith.extui %129 : i1 to i32
      %c0_i32_33 = arith.constant 0 : i32
      %131 = arith.cmpi ne, %130, %c0_i32_33 : i32
      scf.if %131 {
        %c0_34 = arith.constant 0 : index
        %c0_35 = arith.constant 0 : index
        %132 = vector.load %arg14[%c0_34, %c0_35] : memref<1x128xf32, #tpu.memory_space<vmem>>, vector<1x128xf32>
        %c0_36 = arith.constant 0 : index
        %c0_37 = arith.constant 0 : index
        %133 = vector.load %arg8[%c0_36, %c0_37] : memref<128x64xf32, #tpu.memory_space<vmem>>, vector<128x64xf32>
        %cst_38 = arith.constant dense<0.000000e+00> : vector<1x64xf32>
        %134 = tpu.matmul %132, %133, %cst_38 {dimension_numbers = #tpu.dot_dimension_numbers<[1], [0], [0], [1], [0, 0, 1, 1], [], []>} : vector<1x128xf32>, vector<128x64xf32>, vector<1x64xf32> -> vector<1x64xf32>
        %c0_39 = arith.constant 0 : index
        %c0_40 = arith.constant 0 : index
        %135 = vector.load %arg9[%c0_39, %c0_40] : memref<1x64xf32, #tpu.memory_space<vmem>>, vector<1x64xf32>
        %136 = arith.addf %134, %135 : vector<1x64xf32>
        %cst_41 = arith.constant 0.000000e+00 : f32
        %137 = vector.broadcast %cst_41 : f32 to vector<1x64xf32>
        %138 = arith.maximumf %136, %137 : vector<1x64xf32>
        %c0_42 = arith.constant 0 : index
        %c0_43 = arith.constant 0 : index
        %139 = vector.load %arg10[%c0_42, %c0_43] : memref<64x128xf32, #tpu.memory_space<vmem>>, vector<64x128xf32>
        %cst_44 = arith.constant dense<0.000000e+00> : vector<1x128xf32>
        %140 = tpu.matmul %138, %139, %cst_44 {dimension_numbers = #tpu.dot_dimension_numbers<[1], [0], [0], [1], [0, 0, 1, 1], [], []>} : vector<1x64xf32>, vector<64x128xf32>, vector<1x128xf32> -> vector<1x128xf32>
        %c0_45 = arith.constant 0 : index
        %c0_46 = arith.constant 0 : index
        %141 = vector.load %arg11[%c0_45, %c0_46] : memref<1x128xf32, #tpu.memory_space<vmem>>, vector<1x128xf32>
        %142 = arith.addf %140, %141 : vector<1x128xf32>
        %143 = tpu.iota {dimensions = array<i32: 1>} : vector<1x128xi32>
        %c4_i32 = arith.constant 4 : i32
        %c0_i32_47 = arith.constant 0 : i32
        %144 = arith.cmpi eq, %c4_i32, %c0_i32_47 : i32
        %c1_i32_48 = arith.constant 1 : i32
        %145 = arith.select %144, %c1_i32_48, %c4_i32 : i32
        %146 = vector.broadcast %145 : i32 to vector<1x128xi32>
        %147 = arith.remsi %143, %146 : vector<1x128xi32>
        %c0_i32_49 = arith.constant 0 : i32
        %148 = vector.broadcast %c0_i32_49 : i32 to vector<1x128xi32>
        %149 = arith.cmpi ne, %147, %148 : vector<1x128xi32>
        %c0_i32_50 = arith.constant 0 : i32
        %150 = vector.broadcast %c0_i32_50 : i32 to vector<1x128xi32>
        %151 = arith.cmpi slt, %147, %150 : vector<1x128xi32>
        %c0_i32_51 = arith.constant 0 : i32
        %152 = arith.cmpi slt, %145, %c0_i32_51 : i32
        %153 = vector.broadcast %152 : i1 to vector<1x128xi1>
        %154 = vector.broadcast %153 : vector<1x128xi1> to vector<1x128xi1>
        %155 = arith.xori %151, %154 : vector<1x128xi1>
        %156 = arith.andi %155, %149 : vector<1x128xi1>
        %157 = vector.broadcast %145 : i32 to vector<1x128xi32>
        %158 = arith.addi %147, %157 : vector<1x128xi32>
        %159 = arith.select %156, %158, %147 : vector<1x128xi1>, vector<1x128xi32>
        %c0_i32_52 = arith.constant 0 : i32
        %160 = vector.broadcast %c0_i32_52 : i32 to vector<1x128xi32>
        %161 = arith.cmpi eq, %159, %160 : vector<1x128xi32>
        %c9_i32 = arith.constant 9 : i32
        %162 = vector.broadcast %c9_i32 : i32 to vector<1x128xi32>
        %163 = arith.cmpi slt, %143, %162 : vector<1x128xi32>
        %164 = arith.andi %161, %163 : vector<1x128xi1>
        %cst_53 = arith.constant 1.000000e+00 : f32
        %cst_54 = arith.constant 0.000000e+00 : f32
        %165 = vector.broadcast %cst_53 : f32 to vector<1x128xf32>
        %166 = vector.broadcast %cst_54 : f32 to vector<1x128xf32>
        %167 = arith.select %164, %165, %166 : vector<1x128xi1>, vector<1x128xf32>
        %168 = arith.addf %142, %167 : vector<1x128xf32>
        %c0_55 = arith.constant 0 : index
        %c0_56 = arith.constant 0 : index
        %c0_57 = arith.constant 0 : index
        %169 = vector.load %arg12[%c0_55, %c0_56, %c0_57] : memref<1x1x128xf32, #tpu.memory_space<vmem>>, vector<1x1x128xf32>
        %170 = vector.shape_cast %169 : vector<1x1x128xf32> to vector<1x128xf32>
        %171 = vector.shape_cast %168 : vector<1x128xf32> to vector<1x1x128xf32>
        tpu.vector_store %arg12[%c0_55, %c0_56, %c0_57], %171 {strides = array<i32>} : memref<1x1x128xf32, #tpu.memory_space<vmem>>, vector<1x1x128xf32>,
      } else {
      }
    } else {
    }
    return
  }
  func.func @transform_0(%arg0: i32, %arg1: i32, %arg2: i32) -> (i32, i32, i32) {
    %c0_i32 = arith.constant 0 : i32
    %c0_i32_0 = arith.constant 0 : i32
    %c0_i32_1 = arith.constant 0 : i32
    return %arg0, %c0_i32, %c0_i32_0 : i32, i32, i32
  }
  func.func @transform_1(%arg0: i32, %arg1: i32, %arg2: i32) -> (i32, i32, i32, i32) {
    %c0_i32 = arith.constant 0 : i32
    %c0_i32_0 = arith.constant 0 : i32
    %c0_i32_1 = arith.constant 0 : i32
    return %arg0, %arg2, %c0_i32, %c0_i32_0 : i32, i32, i32, i32
  }
  func.func @transform_2(%arg0: i32, %arg1: i32, %arg2: i32) -> (i32, i32) {
    %c0_i32 = arith.constant 0 : i32
    %c0_i32_0 = arith.constant 0 : i32
    %c0_i32_1 = arith.constant 0 : i32
    return %c0_i32, %c0_i32_0 : i32, i32
  }
  func.func @transform_3(%arg0: i32, %arg1: i32, %arg2: i32) -> (i32, i32) {
    %c0_i32 = arith.constant 0 : i32
    %c0_i32_0 = arith.constant 0 : i32
    %c0_i32_1 = arith.constant 0 : i32
    return %c0_i32, %c0_i32_0 : i32, i32
  }
  func.func @transform_4(%arg0: i32, %arg1: i32, %arg2: i32) -> (i32, i32) {
    %c0_i32 = arith.constant 0 : i32
    %c0_i32_0 = arith.constant 0 : i32
    %c0_i32_1 = arith.constant 0 : i32
    return %c0_i32, %c0_i32_0 : i32, i32
  }
  func.func @transform_5(%arg0: i32, %arg1: i32, %arg2: i32) -> (i32, i32) {
    %c0_i32 = arith.constant 0 : i32
    %c0_i32_0 = arith.constant 0 : i32
    %c0_i32_1 = arith.constant 0 : i32
    return %c0_i32, %c0_i32_0 : i32, i32
  }
  func.func @transform_6(%arg0: i32, %arg1: i32, %arg2: i32) -> (i32, i32) {
    %c0_i32 = arith.constant 0 : i32
    %c0_i32_0 = arith.constant 0 : i32
    %c0_i32_1 = arith.constant 0 : i32
    return %c0_i32, %c0_i32_0 : i32, i32
  }
  func.func @transform_7(%arg0: i32, %arg1: i32, %arg2: i32) -> (i32, i32) {
    %c0_i32 = arith.constant 0 : i32
    %c0_i32_0 = arith.constant 0 : i32
    %c0_i32_1 = arith.constant 0 : i32
    return %c0_i32, %c0_i32_0 : i32, i32
  }
  func.func @transform_8(%arg0: i32, %arg1: i32, %arg2: i32) -> (i32, i32) {
    %c0_i32 = arith.constant 0 : i32
    %c0_i32_0 = arith.constant 0 : i32
    %c0_i32_1 = arith.constant 0 : i32
    return %c0_i32, %c0_i32_0 : i32, i32
  }
  func.func @transform_9(%arg0: i32, %arg1: i32, %arg2: i32) -> (i32, i32, i32) {
    %c0_i32 = arith.constant 0 : i32
    %c0_i32_0 = arith.constant 0 : i32
    %c0_i32_1 = arith.constant 0 : i32
    return %arg0, %c0_i32, %c0_i32_0 : i32, i32, i32
  }
}

</mosaic_0001>

<llo_original>
// kernel: tpu_custom_call.1
$region0: #{tpu_custom_call.1}
  #allocation0 [shape = 'u32[]', space=smem, size = 0x4, offset = 0x4, fixed_abs, tag = 'smem constant byte address 0x4 - core index']
  #allocation1 [shape = 'u32[144,128]{1,0:T(1,128)}', space=vmem, size = 0x12000, scoped, tag = 'internal scratch']
  #allocation2 [shape = 'f32[16,128]{1,0:T(8,128)}', space=vmem, size = 0x2000, scoped, tag = 'scratch operand']
  #allocation3 [shape = 'f32[1,128]{1,0:T(1,128)}', space=vmem, size = 0x200, scoped, tag = 'scratch operand']
  %s0 = inlined_call_operand.hbm [shape: f32[2,16,64], index: 0, kind: input, shape index: {}]
  %s1 = inlined_call_operand.hbm [shape: s32[2,2,64,1], index: 1, kind: input, shape index: {}]
  %s2 = inlined_call_operand.hbm [shape: f32[1,64], index: 2, kind: input, shape index: {}]
  %s3 = inlined_call_operand.hbm [shape: f32[64,128], index: 3, kind: input, shape index: {}]
  %s4 = inlined_call_operand.hbm [shape: f32[1,128], index: 4, kind: input, shape index: {}]
  %s5 = inlined_call_operand.hbm [shape: f32[128,64], index: 5, kind: input, shape index: {}]
  %s6 = inlined_call_operand.hbm [shape: f32[1,64], index: 6, kind: input, shape index: {}]
  %s7 = inlined_call_operand.hbm [shape: f32[64,128], index: 7, kind: input, shape index: {}]
  %s8 = inlined_call_operand.hbm [shape: f32[1,128], index: 8, kind: input, shape index: {}]
  %s9 = inlined_call_operand.hbm [shape: f32[2,1,128], index: 9, kind: output, shape index: {}]
  %s10 = sld [smem:[#allocation0]]
  $region121: #{tpu_custom_call.1} parent=0
    _
  %s12 = ssub.s32 1, %s10
  %s13 = scalar_select 0, %s12, %s10
  $region1: #{tpu_custom_call.1} parent=0
    #allocation4 [shape = 'u8[16384]{0}', space=vmem, size = 0x4000, scoped, tag = 'input window, operand 0']
    #allocation5 [shape = 's32[2]{0}', space=sflag, size = 0x8, scoped, tag = 'scoped memory for tpu_custom_call.1']
    #allocation6 [shape = 's32[2]{0}', space=sflag, size = 0x8, scoped, tag = 'scoped memory for tpu_custom_call.1']
    #allocation7 [shape = 'u8[65536]{0}', space=vmem, size = 0x10000, scoped, tag = 'input window, operand 1']
    #allocation8 [shape = 's32[2]{0}', space=sflag, size = 0x8, scoped, tag = 'scoped memory for tpu_custom_call.1']
    #allocation9 [shape = 'u8[512]{0}', space=vmem, size = 0x400, scoped, tag = 'input window, operand 2, single buffered']
    #allocation10 [shape = 'u8[32768]{0}', space=vmem, size = 0x8000, scoped, tag = 'input window, operand 3, single buffered']
    #allocation11 [shape = 's32[1]{0}', space=sflag, size = 0x4, scoped, tag = 'scoped memory for tpu_custom_call.1']
    #allocation12 [shape = 'u8[512]{0}', space=vmem, size = 0x400, scoped, tag = 'input window, operand 4, single buffered']
    #allocation13 [shape = 'u8[65536]{0}', space=vmem, size = 0x10000, scoped, tag = 'input window, operand 5, single buffered']
    #allocation14 [shape = 's32[1]{0}', space=sflag, size = 0x4, scoped, tag = 'scoped memory for tpu_custom_call.1']
    #allocation15 [shape = 'u8[512]{0}', space=vmem, size = 0x400, scoped, tag = 'input window, operand 6, single buffered']
    #allocation16 [shape = 'u8[32768]{0}', space=vmem, size = 0x8000, scoped, tag = 'input window, operand 7, single buffered']
    #allocation17 [shape = 's32[1]{0}', space=sflag, size = 0x4, scoped, tag = 'scoped memory for tpu_custom_call.1']
    #allocation18 [shape = 'u8[512]{0}', space=vmem, size = 0x400, scoped, tag = 'input window, operand 8, single buffered']
    #allocation19 [shape = 'u8[1024]{0}', space=vmem, size = 0x400, scoped, tag = 'output window, operand 0']
    %14 = vsyncpa [#allocation5], 0
    %s15 = scalar_lea.sflag [#allocation5], 1
    %16 = vsyncpa %s15, 0
    %17 = vsyncpa [#allocation8], 0
    %s18 = scalar_lea.sflag [#allocation8], 1
    %19 = vsyncpa %s18, 0
    %20 = vsyncpa [#allocation11], 0
    %21 = vsyncpa [#allocation14], 0
    %22 = vsyncpa [#allocation17], 0
    %23 = vsyncpa [#allocation6], 0
    %s24 = scalar_lea.sflag [#allocation6], 1
    %25 = vsyncpa %s24, 0
    loop: start=0, step=1, limit=10
    $region2: #{tpu_custom_call.1} parent=1 // loop_pre_header
      _
    $region3: #{tpu_custom_call.1} parent=1 // loop_header
      %s27 = sphi 0, %s31
      %p28 = scmp.ge.s32.totalorder %s27, 10
      %s34 = sphi 0, %s53
      %s35 = sphi 0, %s49
      %s36 = sphi 0, %s45
      %s37 = sphi 0, %s34
      %s38 = sphi 0, %s35
      %s39 = sphi 0, %s36
      %s40 = sphi 0, %s37
      %s41 = sphi 0, %s38
      %s42 = sphi 0, %s39
      %s56 = sphi 0, %s58
      %s59 = sphi 0, %s56
      %s60 = sphi 0, %s59
      %s76 = sphi 0, %s60
      %s84 = sphi 0, %s86
      %s87 = sphi 0, %s84
      %s88 = sphi 0, %s87
      %s104 = sphi 0, %s88
      %s108 = sphi 0, %s108
      %s110 = sphi 0, %s108
      %s111 = sphi 0, %s110
      %s125 = sphi 0, %s111
      %s129 = sphi 0, %s129
      %s131 = sphi 0, %s129
      %s132 = sphi 0, %s131
      %s146 = sphi 0, %s132
      %s150 = sphi 0, %s150
      %s152 = sphi 0, %s150
      %s153 = sphi 0, %s152
      %s167 = sphi 0, %s153
      %s171 = sphi 0, %s171
      %s173 = sphi 0, %s171
      %s174 = sphi 0, %s173
      %s188 = sphi 0, %s174
      %s192 = sphi 0, %s192
      %s194 = sphi 0, %s192
      %s195 = sphi 0, %s194
      %s209 = sphi 0, %s195
      %s213 = sphi 0, %s213
      %s215 = sphi 0, %s213
      %s216 = sphi 0, %s215
      %s230 = sphi 0, %s216
      %s234 = sphi 0, %s234
      %s236 = sphi 0, %s234
      %s237 = sphi 0, %s236
      %s251 = sphi 0, %s237
      %s257 = sphi 0, %s259
      %s260 = sphi 0, %s257
      %s261 = sphi 0, %s260
      %s277 = sphi 0, %s261
    $region4: #{tpu_custom_call.1} parent=1 // loop_header_branch
      %30 = sbr.rel (%p28) target = $region8
    $region5: #{tpu_custom_call.1} parent=1 // loop_body
      %s32 = ssub.s32 %s27, 1
      %s33 = ssub.s32 %s27, 2
      %s43 = sadd.s32 1, %s36
      %p44 = scmp.ge.s32.totalorder %s43, 2
      %s45 = scalar_select %p44, 0, %s43
      %s46 = sadd.s32 1, %s35
      %s47 = scalar_select %p44, %s46, %s35
      %p48 = scmp.ge.s32.totalorder %s47, 2
      %s49 = scalar_select %p48, 0, %s47
      %s50 = sadd.s32 1, %s34
      %s51 = scalar_select %p48, %s50, %s34
      %p52 = scmp.ge.s32.totalorder %s51, 2
      %s53 = scalar_select %p52, 0, %s51
      %s54 = ssub.s32 %s34, %s53
      %p55 = scmp.eq.s32.totalorder %s54, 0
      %s57 = sadd.s32 %s56, 1
      %s58 = scalar_select %p55, %s56, %s57
      %p61 = pneg %p55
      %p62 = scmp.eq.s32.totalorder %s27, 7
      %p63 = por %p61, %p62
      %p64 = scmp.ne.s32.totalorder %s56, %s59
      %p65 = scmp.eq.s32.totalorder %s27, 0
      %p66 = por %p64, %p65
      %p67 = scmp.ne.s32.totalorder %s56, %s59
      %p68 = scmp.eq.s32.totalorder %s32, 7
      %p69 = por %p67, %p68
      %p70 = scmp.ne.s32.totalorder %s59, %s60
      %p71 = scmp.eq.s32.totalorder %s32, 0
      %p72 = por %p70, %p71
      %p73 = scmp.ne.s32.totalorder %s59, %s60
      %p74 = scmp.eq.s32.totalorder %s33, 7
      %p75 = por %p73, %p74
      %p77 = scmp.ne.s32.totalorder %s60, %s76
      %p78 = scmp.eq.s32.totalorder %s33, 0
      %p79 = por %p77, %p78
      %s80 = ssub.s32 %s34, %s53
      %s81 = ssub.s32 %s36, %s45
      %s82 = sor.u32 %s80, %s81
      %p83 = scmp.eq.s32.totalorder %s82, 0
      %s85 = sadd.s32 %s84, 1
      %s86 = scalar_select %p83, %s84, %s85
      %p89 = pneg %p83
      %p90 = scmp.eq.s32.totalorder %s27, 7
      %p91 = por %p89, %p90
      %p92 = scmp.ne.s32.totalorder %s84, %s87
      %p93 = scmp.eq.s32.totalorder %s27, 0
      %p94 = por %p92, %p93
      %p95 = scmp.ne.s32.totalorder %s84, %s87
      %p96 = scmp.eq.s32.totalorder %s32, 7
      %p97 = por %p95, %p96
      %p98 = scmp.ne.s32.totalorder %s87, %s88
      %p99 = scmp.eq.s32.totalorder %s32, 0
      %p100 = por %p98, %p99
      %p101 = scmp.ne.s32.totalorder %s87, %s88
      %p102 = scmp.eq.s32.totalorder %s33, 7
      %p103 = por %p101, %p102
      %p105 = scmp.ne.s32.totalorder %s88, %s104
      %p106 = scmp.eq.s32.totalorder %s33, 0
      %p107 = por %p105, %p106
      %s109 = sadd.s32 %s108, 1
      %p112 = scmp.eq.s32.totalorder %s27, 7
      %p113 = scmp.ne.s32.totalorder %s108, %s110
      %p114 = scmp.eq.s32.totalorder %s27, 0
      %p115 = por %p113, %p114
      %p116 = scmp.ne.s32.totalorder %s108, %s110
      %p117 = scmp.eq.s32.totalorder %s32, 7
      %p118 = por %p116, %p117
      %p119 = scmp.ne.s32.totalorder %s110, %s111
      %p120 = scmp.eq.s32.totalorder %s32, 0
      %p121 = por %p119, %p120
      %p122 = scmp.ne.s32.totalorder %s110, %s111
      %p123 = scmp.eq.s32.totalorder %s33, 7
      %p124 = por %p122, %p123
      %p126 = scmp.ne.s32.totalorder %s111, %s125
      %p127 = scmp.eq.s32.totalorder %s33, 0
      %p128 = por %p126, %p127
      %s130 = sadd.s32 %s129, 1
      %p133 = scmp.eq.s32.totalorder %s27, 7
      %p134 = scmp.ne.s32.totalorder %s129, %s131
      %p135 = scmp.eq.s32.totalorder %s27, 0
      %p136 = por %p134, %p135
      %p137 = scmp.ne.s32.totalorder %s129, %s131
      %p138 = scmp.eq.s32.totalorder %s32, 7
      %p139 = por %p137, %p138
      %p140 = scmp.ne.s32.totalorder %s131, %s132
      %p141 = scmp.eq.s32.totalorder %s32, 0
      %p142 = por %p140, %p141
      %p143 = scmp.ne.s32.totalorder %s131, %s132
      %p144 = scmp.eq.s32.totalorder %s33, 7
      %p145 = por %p143, %p144
      %p147 = scmp.ne.s32.totalorder %s132, %s146
      %p148 = scmp.eq.s32.totalorder %s33, 0
      %p149 = por %p147, %p148
      %s151 = sadd.s32 %s150, 1
      %p154 = scmp.eq.s32.totalorder %s27, 7
      %p155 = scmp.ne.s32.totalorder %s150, %s152
      %p156 = scmp.eq.s32.totalorder %s27, 0
      %p157 = por %p155, %p156
      %p158 = scmp.ne.s32.totalorder %s150, %s152
      %p159 = scmp.eq.s32.totalorder %s32, 7
      %p160 = por %p158, %p159
      %p161 = scmp.ne.s32.totalorder %s152, %s153
      %p162 = scmp.eq.s32.totalorder %s32, 0
      %p163 = por %p161, %p162
      %p164 = scmp.ne.s32.totalorder %s152, %s153
      %p165 = scmp.eq.s32.totalorder %s33, 7
      %p166 = por %p164, %p165
      %p168 = scmp.ne.s32.totalorder %s153, %s167
      %p169 = scmp.eq.s32.totalorder %s33, 0
      %p170 = por %p168, %p169
      %s172 = sadd.s32 %s171, 1
      %p175 = scmp.eq.s32.totalorder %s27, 7
      %p176 = scmp.ne.s32.totalorder %s171, %s173
      %p177 = scmp.eq.s32.totalorder %s27, 0
      %p178 = por %p176, %p177
      %p179 = scmp.ne.s32.totalorder %s171, %s173
      %p180 = scmp.eq.s32.totalorder %s32, 7
      %p181 = por %p179, %p180
      %p182 = scmp.ne.s32.totalorder %s173, %s174
      %p183 = scmp.eq.s32.totalorder %s32, 0
      %p184 = por %p182, %p183
      %p185 = scmp.ne.s32.totalorder %s173, %s174
      %p186 = scmp.eq.s32.totalorder %s33, 7
      %p187 = por %p185, %p186
      %p189 = scmp.ne.s32.totalorder %s174, %s188
      %p190 = scmp.eq.s32.totalorder %s33, 0
      %p191 = por %p189, %p190
      %s193 = sadd.s32 %s192, 1
      %p196 = scmp.eq.s32.totalorder %s27, 7
      %p197 = scmp.ne.s32.totalorder %s192, %s194
      %p198 = scmp.eq.s32.totalorder %s27, 0
      %p199 = por %p197, %p198
      %p200 = scmp.ne.s32.totalorder %s192, %s194
      %p201 = scmp.eq.s32.totalorder %s32, 7
      %p202 = por %p200, %p201
      %p203 = scmp.ne.s32.totalorder %s194, %s195
      %p204 = scmp.eq.s32.totalorder %s32, 0
      %p205 = por %p203, %p204
      %p206 = scmp.ne.s32.totalorder %s194, %s195
      %p207 = scmp.eq.s32.totalorder %s33, 7
      %p208 = por %p206, %p207
      %p210 = scmp.ne.s32.totalorder %s195, %s209
      %p211 = scmp.eq.s32.totalorder %s33, 0
      %p212 = por %p210, %p211
      %s214 = sadd.s32 %s213, 1
      %p217 = scmp.eq.s32.totalorder %s27, 7
      %p218 = scmp.ne.s32.totalorder %s213, %s215
      %p219 = scmp.eq.s32.totalorder %s27, 0
      %p220 = por %p218, %p219
      %p221 = scmp.ne.s32.totalorder %s213, %s215
      %p222 = scmp.eq.s32.totalorder %s32, 7
      %p223 = por %p221, %p222
      %p224 = scmp.ne.s32.totalorder %s215, %s216
      %p225 = scmp.eq.s32.totalorder %s32, 0
      %p226 = por %p224, %p225
      %p227 = scmp.ne.s32.totalorder %s215, %s216
      %p228 = scmp.eq.s32.totalorder %s33, 7
      %p229 = por %p227, %p228
      %p231 = scmp.ne.s32.totalorder %s216, %s230
      %p232 = scmp.eq.s32.totalorder %s33, 0
      %p233 = por %p231, %p232
      %s235 = sadd.s32 %s234, 1
      %p238 = scmp.eq.s32.totalorder %s27, 7
      %p239 = scmp.ne.s32.totalorder %s234, %s236
      %p240 = scmp.eq.s32.totalorder %s27, 0
      %p241 = por %p239, %p240
      %p242 = scmp.ne.s32.totalorder %s234, %s236
      %p243 = scmp.eq.s32.totalorder %s32, 7
      %p244 = por %p242, %p243
      %p245 = scmp.ne.s32.totalorder %s236, %s237
      %p246 = scmp.eq.s32.totalorder %s32, 0
      %p247 = por %p245, %p246
      %p248 = scmp.ne.s32.totalorder %s236, %s237
      %p249 = scmp.eq.s32.totalorder %s33, 7
      %p250 = por %p248, %p249
      %p252 = scmp.ne.s32.totalorder %s237, %s251
      %p253 = scmp.eq.s32.totalorder %s33, 0
      %p254 = por %p252, %p253
      %s255 = ssub.s32 %s34, %s53
      %p256 = scmp.eq.s32.totalorder %s255, 0
      %s258 = sadd.s32 %s257, 1
      %s259 = scalar_select %p256, %s257, %s258
      %p262 = pneg %p256
      %p263 = scmp.eq.s32.totalorder %s27, 7
      %p264 = por %p262, %p263
      %p265 = scmp.ne.s32.totalorder %s257, %s260
      %p266 = scmp.eq.s32.totalorder %s27, 0
      %p267 = por %p265, %p266
      %p268 = scmp.ne.s32.totalorder %s257, %s260
      %p269 = scmp.eq.s32.totalorder %s32, 7
      %p270 = por %p268, %p269
      %p271 = scmp.ne.s32.totalorder %s260, %s261
      %p272 = scmp.eq.s32.totalorder %s32, 0
      %p273 = por %p271, %p272
      %p274 = scmp.ne.s32.totalorder %s260, %s261
      %p275 = scmp.eq.s32.totalorder %s33, 7
      %p276 = por %p274, %p275
      %p278 = scmp.ne.s32.totalorder %s261, %s277
      %p279 = scmp.eq.s32.totalorder %s33, 0
      %p280 = por %p278, %p279
      %p281 = scmp.le.s32.totalorder 1, %s27
      %p282 = scmp.lt.s32.totalorder %s27, 9
      %p283 = pnand %p281, %p282
      %p284 = pneg %p283
      // Predicated region
      $region9: #{tpu_custom_call.1} parent=5 // pred_check
        _
      $region10: #{tpu_custom_call.1} parent=5 // pred_check_branch
        %286 = sbr.rel (%p283) target = $region12
      $region11: #{tpu_custom_call.1} parent=5 // pred_region
        %s287 = ssub.s32 %s27, 1
        // Predicated region
        $region13: #{tpu_custom_call.1} parent=11 // pred_check
          %p288 = pneg %p121
        $region14: #{tpu_custom_call.1} parent=11 // pred_check_branch
          %290 = sbr.rel (%p288) target = $region16
        $region15: #{tpu_custom_call.1} parent=11 // pred_region
          %s292 = ssub.s32 16, 16
          %293 = vsyncadd [#allocation8], %s292
          %s295 = sshll.u32 [#allocation9], 4
          %s296 = int_to_ptr.vmem [resolvable:$true] %s295
          %298 = dma.hbm_to_vmem [thread:$0]  %s2, 16, %s296, [#allocation8]
        $region16: #{tpu_custom_call.1} parent=11 // pred_fallthru
          _
        // Predicated region
        $region17: #{tpu_custom_call.1} parent=11 // pred_check
          %p299 = pneg %p142
        $region18: #{tpu_custom_call.1} parent=11 // pred_check_branch
          %301 = sbr.rel (%p299) target = $region20
        $region19: #{tpu_custom_call.1} parent=11 // pred_region
          %s303 = ssub.s32 1024, 1024
          %304 = vsyncadd [#allocation11], %s303
          %s305 = sshll.u32 [#allocation10], 4
          %s306 = int_to_ptr.vmem [resolvable:$true] %s305
          %311 = dma.hbm_to_vmem [thread:$0]  %s3, 1024, %s306, [#allocation11], 128, 128, 8
        $region20: #{tpu_custom_call.1} parent=11 // pred_fallthru
          _
        // Predicated region
        $region21: #{tpu_custom_call.1} parent=11 // pred_check
          %p312 = pneg %p163
        $region22: #{tpu_custom_call.1} parent=11 // pred_check_branch
          %314 = sbr.rel (%p312) target = $region24
        $region23: #{tpu_custom_call.1} parent=11 // pred_region
          %s316 = ssub.s32 16, 16
          %317 = vsyncadd [#allocation11], %s316
          %s319 = sshll.u32 [#allocation12], 4
          %s320 = int_to_ptr.vmem [resolvable:$true] %s319
          %322 = dma.hbm_to_vmem [thread:$0]  %s4, 16, %s320, [#allocation11]
        $region24: #{tpu_custom_call.1} parent=11 // pred_fallthru
          _
        // Predicated region
        $region25: #{tpu_custom_call.1} parent=11 // pred_check
          %p323 = pneg %p184
        $region26: #{tpu_custom_call.1} parent=11 // pred_check_branch
          %325 = sbr.rel (%p323) target = $region28
        $region27: #{tpu_custom_call.1} parent=11 // pred_region
          %s327 = ssub.s32 2048, 2048
          %328 = vsyncadd [#allocation14], %s327
          %s329 = sshll.u32 [#allocation13], 4
          %s330 = int_to_ptr.vmem [resolvable:$true] %s329
          %335 = dma.hbm_to_vmem [thread:$0]  %s5, 2048, %s330, [#allocation14], 128, 128, 8
        $region28: #{tpu_custom_call.1} parent=11 // pred_fallthru
          _
        // Predicated region
        $region29: #{tpu_custom_call.1} parent=11 // pred_check
          %p336 = pneg %p205
        $region30: #{tpu_custom_call.1} parent=11 // pred_check_branch
          %338 = sbr.rel (%p336) target = $region32
        $region31: #{tpu_custom_call.1} parent=11 // pred_region
          %s340 = ssub.s32 16, 16
          %341 = vsyncadd [#allocation14], %s340
          %s343 = sshll.u32 [#allocation15], 4
          %s344 = int_to_ptr.vmem [resolvable:$true] %s343
          %346 = dma.hbm_to_vmem [thread:$0]  %s6, 16, %s344, [#allocation14]
        $region32: #{tpu_custom_call.1} parent=11 // pred_fallthru
          _
        // Predicated region
        $region33: #{tpu_custom_call.1} parent=11 // pred_check
          %p347 = pneg %p226
        $region34: #{tpu_custom_call.1} parent=11 // pred_check_branch
          %349 = sbr.rel (%p347) target = $region36
        $region35: #{tpu_custom_call.1} parent=11 // pred_region
          %s351 = ssub.s32 1024, 1024
          %352 = vsyncadd [#allocation17], %s351
          %s353 = sshll.u32 [#allocation16], 4
          %s354 = int_to_ptr.vmem [resolvable:$true] %s353
          %359 = dma.hbm_to_vmem [thread:$0]  %s7, 1024, %s354, [#allocation17], 128, 128, 8
        $region36: #{tpu_custom_call.1} parent=11 // pred_fallthru
          _
        // Predicated region
        $region37: #{tpu_custom_call.1} parent=11 // pred_check
          %p360 = pneg %p247
        $region38: #{tpu_custom_call.1} parent=11 // pred_check_branch
          %362 = sbr.rel (%p360) target = $region40
        $region39: #{tpu_custom_call.1} parent=11 // pred_region
          %s364 = ssub.s32 16, 16
          %365 = vsyncadd [#allocation17], %s364
          %s367 = sshll.u32 [#allocation18], 4
          %s368 = int_to_ptr.vmem [resolvable:$true] %s367
          %370 = dma.hbm_to_vmem [thread:$0]  %s8, 16, %s368, [#allocation17]
        $region40: #{tpu_custom_call.1} parent=11 // pred_fallthru
          _
      $region12: #{tpu_custom_call.1} parent=5 // pred_fallthru
        _
      %p371 = scmp.lt.s32.totalorder %s27, 8
      // Predicated region
      $region41: #{tpu_custom_call.1} parent=5 // pred_check
        %p372 = pneg %p371
      $region42: #{tpu_custom_call.1} parent=5 // pred_check_branch
        %374 = sbr.rel (%p372) target = $region44
      $region43: #{tpu_custom_call.1} parent=5 // pred_region
        // Predicated region
        $region45: #{tpu_custom_call.1} parent=43 // pred_check
          %p375 = pneg %p66
        $region46: #{tpu_custom_call.1} parent=43 // pred_check_branch
          %377 = sbr.rel (%p375) target = $region48
        $region47: #{tpu_custom_call.1} parent=43 // pred_region
          %s378 = sand.u32 %s56, 1
          %s379 = scalar_lea.sflag [#allocation5], %s378
          %s380 = sand.u32 %s56, 1
          %s381 = smul.addr %s380, 16
          %s382 = scalar_lea.vmem [#allocation4], %s381
          %s384 = ssub.s32 256, 256
          %385 = vsyncadd %s379, %s384
          %s386 = smul.addr %s34, 2
          %s387 = smul.addr %s386, 128
          %s388 = scalar_lea.hbm %s0, %s387
          %s389 = sshll.u32 %s382, 4
          %s390 = int_to_ptr.vmem [resolvable:$true] %s389
          %395 = dma.hbm_to_vmem [thread:$0]  %s388, 256, %s390, %s379, 128, 128, 8
        $region48: #{tpu_custom_call.1} parent=43 // pred_fallthru
          _
        // Predicated region
        $region49: #{tpu_custom_call.1} parent=43 // pred_check
          %p396 = pneg %p94
        $region50: #{tpu_custom_call.1} parent=43 // pred_check_branch
          %398 = sbr.rel (%p396) target = $region52
        $region51: #{tpu_custom_call.1} parent=43 // pred_region
          %s399 = sand.u32 %s27, 1
          %s400 = scalar_lea.sflag [#allocation8], %s399
          %s401 = sand.u32 %s84, 1
          %s402 = smul.addr %s401, 64
          %s403 = scalar_lea.vmem [#allocation7], %s402
          %s405 = ssub.s32 1024, 1024
          %406 = vsyncadd %s400, %s405
          %s407 = smul.addr %s36, 8
          %s408 = smul.addr %s34, 16
          %s409 = sadd.s32 %s407, %s408
          %s410 = smul.addr %s409, 128
          %s411 = scalar_lea.hbm %s1, %s410
          %s412 = sshll.u32 %s403, 4
          %s413 = int_to_ptr.vmem [resolvable:$true] %s412
          %418 = dma.hbm_to_vmem [thread:$0]  %s411, 1024, %s413, %s400, 128, 128, 8
        $region52: #{tpu_custom_call.1} parent=43 // pred_fallthru
          _
      $region44: #{tpu_custom_call.1} parent=5 // pred_fallthru
        _
      %p419 = scmp.le.s32.totalorder 1, %s27
      %p420 = scmp.lt.s32.totalorder %s27, 9
      %p421 = pnand %p419, %p420
      %p422 = pneg %p421
      // Predicated region
      $region53: #{tpu_custom_call.1} parent=5 // pred_check
        _
      $region54: #{tpu_custom_call.1} parent=5 // pred_check_branch
        %424 = sbr.rel (%p421) target = $region56
      $region55: #{tpu_custom_call.1} parent=5 // pred_region
        %s425 = ssub.s32 %s27, 1
        %s426 = sand.u32 %s59, 1
        %s427 = scalar_lea.sflag [#allocation5], %s426
        %s428 = sand.u32 %s59, 1
        %s429 = smul.addr %s428, 16
        %s430 = scalar_lea.vmem [#allocation4], %s429
        // Predicated region
        $region57: #{tpu_custom_call.1} parent=55 // pred_check
          %p431 = pneg %p72
        $region58: #{tpu_custom_call.1} parent=55 // pred_check_branch
          %433 = sbr.rel (%p431) target = $region60
        $region59: #{tpu_custom_call.1} parent=55 // pred_region
          %434 = dma.done %s427, 256
        $region60: #{tpu_custom_call.1} parent=55 // pred_fallthru
          _
        %s435 = sand.u32 %s32, 1
        %s436 = scalar_lea.sflag [#allocation8], %s435
        %s437 = sand.u32 %s87, 1
        %s438 = smul.addr %s437, 64
        %s439 = scalar_lea.vmem [#allocation7], %s438
        // Predicated region
        $region61: #{tpu_custom_call.1} parent=55 // pred_check
          %p440 = pneg %p100
        $region62: #{tpu_custom_call.1} parent=55 // pred_check_branch
          %442 = sbr.rel (%p440) target = $region64
        $region63: #{tpu_custom_call.1} parent=55 // pred_region
          %443 = dma.done %s436, 1024
        $region64: #{tpu_custom_call.1} parent=55 // pred_fallthru
          _
        // Predicated region
        $region65: #{tpu_custom_call.1} parent=55 // pred_check
          %p444 = pneg %p121
        $region66: #{tpu_custom_call.1} parent=55 // pred_check_branch
          %446 = sbr.rel (%p444) target = $region68
        $region67: #{tpu_custom_call.1} parent=55 // pred_region
          %447 = dma.done [#allocation8], 16
        $region68: #{tpu_custom_call.1} parent=55 // pred_fallthru
          _
        // Predicated region
        $region69: #{tpu_custom_call.1} parent=55 // pred_check
          %p448 = pneg %p142
        $region70: #{tpu_custom_call.1} parent=55 // pred_check_branch
          %450 = sbr.rel (%p448) target = $region72
        $region71: #{tpu_custom_call.1} parent=55 // pred_region
          %451 = dma.done [#allocation11], 1024
        $region72: #{tpu_custom_call.1} parent=55 // pred_fallthru
          _
        // Predicated region
        $region73: #{tpu_custom_call.1} parent=55 // pred_check
          %p452 = pneg %p163
        $region74: #{tpu_custom_call.1} parent=55 // pred_check_branch
          %454 = sbr.rel (%p452) target = $region76
        $region75: #{tpu_custom_call.1} parent=55 // pred_region
          %455 = dma.done [#allocation11], 16
        $region76: #{tpu_custom_call.1} parent=55 // pred_fallthru
          _
        // Predicated region
        $region77: #{tpu_custom_call.1} parent=55 // pred_check
          %p456 = pneg %p184
        $region78: #{tpu_custom_call.1} parent=55 // pred_check_branch
          %458 = sbr.rel (%p456) target = $region80
        $region79: #{tpu_custom_call.1} parent=55 // pred_region
          %459 = dma.done [#allocation14], 2048
        $region80: #{tpu_custom_call.1} parent=55 // pred_fallthru
          _
        // Predicated region
        $region81: #{tpu_custom_call.1} parent=55 // pred_check
          %p460 = pneg %p205
        $region82: #{tpu_custom_call.1} parent=55 // pred_check_branch
          %462 = sbr.rel (%p460) target = $region84
        $region83: #{tpu_custom_call.1} parent=55 // pred_region
          %463 = dma.done [#allocation14], 16
        $region84: #{tpu_custom_call.1} parent=55 // pred_fallthru
          _
        // Predicated region
        $region85: #{tpu_custom_call.1} parent=55 // pred_check
          %p464 = pneg %p226
        $region86: #{tpu_custom_call.1} parent=55 // pred_check_branch
          %466 = sbr.rel (%p464) target = $region88
        $region87: #{tpu_custom_call.1} parent=55 // pred_region
          %467 = dma.done [#allocation17], 1024
        $region88: #{tpu_custom_call.1} parent=55 // pred_fallthru
          _
        // Predicated region
        $region89: #{tpu_custom_call.1} parent=55 // pred_check
          %p468 = pneg %p247
        $region90: #{tpu_custom_call.1} parent=55 // pred_check_branch
          %470 = sbr.rel (%p468) target = $region92
        $region91: #{tpu_custom_call.1} parent=55 // pred_region
          %471 = dma.done [#allocation17], 16
        $region92: #{tpu_custom_call.1} parent=55 // pred_fallthru
          _
        %s472 = sand.u32 %s59, 1
        %s473 = scalar_lea.sflag [#allocation5], %s472
        %s474 = sand.u32 %s59, 1
        %s475 = smul.addr %s474, 16
        %s476 = scalar_lea.vmem [#allocation4], %s475
        %p477 = pneg %p72
        %p478 = pneg %p69
        %s479 = sand.u32 %s32, 1
        %s480 = scalar_lea.sflag [#allocation8], %s479
        %s481 = sand.u32 %s87, 1
        %s482 = smul.addr %s481, 64
        %s483 = scalar_lea.vmem [#allocation7], %s482
        %p484 = pneg %p100
        %p485 = pneg %p97
        %p486 = pneg %p121
        %p487 = pneg %p118
        %p488 = pneg %p142
        %p489 = pneg %p139
        %p490 = pneg %p163
        %p491 = pneg %p160
        %p492 = pneg %p184
        %p493 = pneg %p181
        %p494 = pneg %p205
        %p495 = pneg %p202
        %p496 = pneg %p226
        %p497 = pneg %p223
        %p498 = pneg %p247
        %p499 = pneg %p244
        %p500 = pneg %p273
        %p501 = pneg %p270
        %s502 = sand.u32 %s260, 1
        %s503 = scalar_lea.sflag [#allocation6], %s502
        %s504 = sand.u32 %s260, 1
        %s505 = scalar_lea.vmem [#allocation19], %s504
        %s507 = smul.u32 %s39, 8
        %v508 = vld [vmem:[%s439] sm:$0xff]
        %v509 = vld [vmem:[%s439 + $0x8] sm:$0xff]
        %v510 = vld [vmem:[%s439 + $0x10] sm:$0xff]
        %v511 = vld [vmem:[%s439 + $0x18] sm:$0xff]
        %v512 = vld [vmem:[%s439 + $0x20] sm:$0xff]
        %v513 = vld [vmem:[%s439 + $0x28] sm:$0xff]
        %v514 = vld [vmem:[%s439 + $0x30] sm:$0xff]
        %v515 = vld [vmem:[%s439 + $0x38] sm:$0xff]
        %v516 = vlaneseq
        %v517 = vand.u32 %v516, 127
        %p518 = scmp.eq.s32.totalorder %s38, 0
        // Predicated region
        $region93: #{tpu_custom_call.1} parent=55 // pred_check
          %p519 = pneg %p518
        $region94: #{tpu_custom_call.1} parent=55 // pred_check_branch
          %521 = sbr.rel (%p519) target = $region96
        $region95: #{tpu_custom_call.1} parent=55 // pred_region
          %v522 = vld [vmem:[%s430] sm:$0xff]
          %v523 = vld [vmem:[%s430 + $0x8] sm:$0xff]
          %v524 = vpack.c.bf16 %v523, %v522
          %s525 = scalar_lea.vmem %s430, %s507 [#allocation4]
          %v526 = vld [vmem:[%s525] sm:$0xff]
          %v527 = vpack.c.bf16 %v526, %v526
          %v528 = vunpack.c.l.bf16 %v527
          %v529 = vld [vmem:[#allocation9] sm:$0x1]
          %530 = vset.pattern.permute.xlu0 0
          %531 = vperm.xlu0 %530, %v508
          %v532 = vpop.permute.xlu0 %531
          %vm533 = vcmp.eq.s32.totalorder %v517, %v532
          %v534 = vsel %vm533, 1, 0
          %v535 = vcvt.s32.f32 %v534
          %v536 = vpack.c.bf16 %v535, %v535
          %vm537 = vcmask 130048
          %v539 = vsel %vm537, %v536, 0
          %541 = vmatprep.subr.bf16.mxu0 0
          %542 = vmatpush1.bf16.msra.mxu0 %v524
          %543 = vmatprep.subr.bf16.mxu0 0
          %544 = vmatpush1.bf16.msra.mxu0 0
          %545 = vmatprep.subr.bf16.mxu0 0
          %546 = vmatpush1.bf16.msra.mxu0 0
          %547 = vmatprep.subr.bf16.mxu0 0
          %548 = vmatpush1.bf16.msra.mxu0 0
          %549 = vmatprep.subr.bf16.mxu0 0
          %550 = vmatpush1.bf16.msra.mxu0 0
          %551 = vmatprep.subr.bf16.mxu0 0
          %552 = vmatpush1.bf16.msra.mxu0 0
          %553 = vmatprep.subr.bf16.mxu0 0
          %554 = vmatpush1.bf16.msra.mxu0 0
          %555 = vmatprep.subr.bf16.mxu0 0
          %556 = vmatpush1.bf16.msra.mxu0 0
          %557 = vmatprep.subr.bf16.mxu0 0
          %558 = vmatpush1.bf16.msra.mxu0 0
          %559 = vmatprep.subr.bf16.mxu0 0
          %560 = vmatpush1.bf16.msra.mxu0 0
          %561 = vmatprep.subr.bf16.mxu0 0
          %562 = vmatpush1.bf16.msra.mxu0 0
          %563 = vmatprep.subr.bf16.mxu0 0
          %564 = vmatpush1.bf16.msra.mxu0 0
          %565 = vmatprep.subr.bf16.mxu0 0
          %566 = vmatpush1.bf16.msra.mxu0 0
          %567 = vmatprep.subr.bf16.mxu0 0
          %568 = vmatpush1.bf16.msra.mxu0 0
          %569 = vmatprep.subr.bf16.mxu0 0
          %570 = vmatpush1.bf16.msra.mxu0 0
          %571 = vmatprep.subr.bf16.mxu0 0
          %572 = vmatpush1.bf16.msra.mxu0 0
          %573 = vmatprep.mubr.bf16.mxu0 0
          %574 = vmatmul.mubr.bf16.gmra.mrb[0].mxu0 %v539
          %v575 = vpop.f32.mrb[0].mxu0
          %v576 = vadd.f32 0.0, %v575
          %v577 = vpop.f32.mrb[0].mxu0
          %v578 = vpop.f32.mrb[0].mxu0
          %v579 = vpop.f32.mrb[0].mxu0
          %580 = vdwg.mxu0
          %v581 = vsub.f32 %v576, %v528
          %v583 = vlaneseq
          %v584 = vshrl.u32 %v583, 7
          %v585 = vsub.s32 0, %v584
          %v586 = vrot.slane %v529, %v585
          %v588 = vadd.f32 %v581, %v586
          %v589 = vmax.f32 %v588, 0.0
          %590 = vset.pattern.permute.xlu0 0
          %591 = vperm.xlu0 %590, %v509
          %v592 = vpop.permute.xlu0 %591
          %vm593 = vcmp.eq.s32.totalorder %v517, %v592
          %v594 = vsel %vm593, 1, 0
          %v595 = vcvt.s32.f32 %v594
          %v596 = vpack.c.bf16 %v595, %v595
          %v598 = vsel %vm537, %v596, 0
          %600 = vmatprep.subr.bf16.mxu0 0
          %601 = vmatpush1.bf16.msra.mxu0 %v524
          %602 = vmatprep.subr.bf16.mxu0 0
          %603 = vmatpush1.bf16.msra.mxu0 0
          %604 = vmatprep.subr.bf16.mxu0 0
          %605 = vmatpush1.bf16.msra.mxu0 0
          %606 = vmatprep.subr.bf16.mxu0 0
          %607 = vmatpush1.bf16.msra.mxu0 0
          %608 = vmatprep.subr.bf16.mxu0 0
          %609 = vmatpush1.bf16.msra.mxu0 0
          %610 = vmatprep.subr.bf16.mxu0 0
          %611 = vmatpush1.bf16.msra.mxu0 0
          %612 = vmatprep.subr.bf16.mxu0 0
          %613 = vmatpush1.bf16.msra.mxu0 0
          %614 = vmatprep.subr.bf16.mxu0 0
          %615 = vmatpush1.bf16.msra.mxu0 0
          %616 = vmatprep.subr.bf16.mxu0 0
          %617 = vmatpush1.bf16.msra.mxu0 0
          %618 = vmatprep.subr.bf16.mxu0 0
          %619 = vmatpush1.bf16.msra.mxu0 0
          %620 = vmatprep.subr.bf16.mxu0 0
          %621 = vmatpush1.bf16.msra.mxu0 0
          %622 = vmatprep.subr.bf16.mxu0 0
          %623 = vmatpush1.bf16.msra.mxu0 0
          %624 = vmatprep.subr.bf16.mxu0 0
          %625 = vmatpush1.bf16.msra.mxu0 0
          %626 = vmatprep.subr.bf16.mxu0 0
          %627 = vmatpush1.bf16.msra.mxu0 0
          %628 = vmatprep.subr.bf16.mxu0 0
          %629 = vmatpush1.bf16.msra.mxu0 0
          %630 = vmatprep.subr.bf16.mxu0 0
          %631 = vmatpush1.bf16.msra.mxu0 0
          %632 = vmatprep.mubr.bf16.mxu0 0
          %633 = vmatmul.mubr.bf16.gmra.mrb[0].mxu0 %v598
          %v634 = vpop.f32.mrb[0].mxu0
          %v635 = vadd.f32 0.0, %v634
          %v636 = vpop.f32.mrb[0].mxu0
          %v637 = vpop.f32.mrb[0].mxu0
          %v638 = vpop.f32.mrb[0].mxu0
          %639 = vdwg.mxu0
          %v640 = vsub.f32 %v635, %v528
          %v641 = vadd.f32 %v640, %v586
          %v642 = vmax.f32 %v641, 0.0
          %v643 = vmax.f32 %v589, %v642
          %644 = vset.pattern.permute.xlu0 0
          %645 = vperm.xlu0 %644, %v510
          %v646 = vpop.permute.xlu0 %645
          %vm647 = vcmp.eq.s32.totalorder %v517, %v646
          %v648 = vsel %vm647, 1, 0
          %v649 = vcvt.s32.f32 %v648
          %v650 = vpack.c.bf16 %v649, %v649
          %v652 = vsel %vm537, %v650, 0
          %654 = vmatprep.subr.bf16.mxu0 0
          %655 = vmatpush1.bf16.msra.mxu0 %v524
          %656 = vmatprep.subr.bf16.mxu0 0
          %657 = vmatpush1.bf16.msra.mxu0 0
          %658 = vmatprep.subr.bf16.mxu0 0
          %659 = vmatpush1.bf16.msra.mxu0 0
          %660 = vmatprep.subr.bf16.mxu0 0
          %661 = vmatpush1.bf16.msra.mxu0 0
          %662 = vmatprep.subr.bf16.mxu0 0
          %663 = vmatpush1.bf16.msra.mxu0 0
          %664 = vmatprep.subr.bf16.mxu0 0
          %665 = vmatpush1.bf16.msra.mxu0 0
          %666 = vmatprep.subr.bf16.mxu0 0
          %667 = vmatpush1.bf16.msra.mxu0 0
          %668 = vmatprep.subr.bf16.mxu0 0
          %669 = vmatpush1.bf16.msra.mxu0 0
          %670 = vmatprep.subr.bf16.mxu0 0
          %671 = vmatpush1.bf16.msra.mxu0 0
          %672 = vmatprep.subr.bf16.mxu0 0
          %673 = vmatpush1.bf16.msra.mxu0 0
          %674 = vmatprep.subr.bf16.mxu0 0
          %675 = vmatpush1.bf16.msra.mxu0 0
          %676 = vmatprep.subr.bf16.mxu0 0
          %677 = vmatpush1.bf16.msra.mxu0 0
          %678 = vmatprep.subr.bf16.mxu0 0
          %679 = vmatpush1.bf16.msra.mxu0 0
          %680 = vmatprep.subr.bf16.mxu0 0
          %681 = vmatpush1.bf16.msra.mxu0 0
          %682 = vmatprep.subr.bf16.mxu0 0
          %683 = vmatpush1.bf16.msra.mxu0 0
          %684 = vmatprep.subr.bf16.mxu0 0
          %685 = vmatpush1.bf16.msra.mxu0 0
          %686 = vmatprep.mubr.bf16.mxu0 0
          %687 = vmatmul.mubr.bf16.gmra.mrb[0].mxu0 %v652
          %v688 = vpop.f32.mrb[0].mxu0
          %v689 = vadd.f32 0.0, %v688
          %v690 = vpop.f32.mrb[0].mxu0
          %v691 = vpop.f32.mrb[0].mxu0
          %v692 = vpop.f32.mrb[0].mxu0
          %693 = vdwg.mxu0
          %v694 = vsub.f32 %v689, %v528
          %v695 = vadd.f32 %v694, %v586
          %v696 = vmax.f32 %v695, 0.0
          %v697 = vmax.f32 %v643, %v696
          %698 = vset.pattern.permute.xlu0 0
          %699 = vperm.xlu0 %698, %v511
          %v700 = vpop.permute.xlu0 %699
          %vm701 = vcmp.eq.s32.totalorder %v517, %v700
          %v702 = vsel %vm701, 1, 0
          %v703 = vcvt.s32.f32 %v702
          %v704 = vpack.c.bf16 %v703, %v703
          %v706 = vsel %vm537, %v704, 0
          %708 = vmatprep.subr.bf16.mxu0 0
          %709 = vmatpush1.bf16.msra.mxu0 %v524
          %710 = vmatprep.subr.bf16.mxu0 0
          %711 = vmatpush1.bf16.msra.mxu0 0
          %712 = vmatprep.subr.bf16.mxu0 0
          %713 = vmatpush1.bf16.msra.mxu0 0
          %714 = vmatprep.subr.bf16.mxu0 0
          %715 = vmatpush1.bf16.msra.mxu0 0
          %716 = vmatprep.subr.bf16.mxu0 0
          %717 = vmatpush1.bf16.msra.mxu0 0
          %718 = vmatprep.subr.bf16.mxu0 0
          %719 = vmatpush1.bf16.msra.mxu0 0
          %720 = vmatprep.subr.bf16.mxu0 0
          %721 = vmatpush1.bf16.msra.mxu0 0
          %722 = vmatprep.subr.bf16.mxu0 0
          %723 = vmatpush1.bf16.msra.mxu0 0
          %724 = vmatprep.subr.bf16.mxu0 0
          %725 = vmatpush1.bf16.msra.mxu0 0
          %726 = vmatprep.subr.bf16.mxu0 0
          %727 = vmatpush1.bf16.msra.mxu0 0
          %728 = vmatprep.subr.bf16.mxu0 0
          %729 = vmatpush1.bf16.msra.mxu0 0
          %730 = vmatprep.subr.bf16.mxu0 0
          %731 = vmatpush1.bf16.msra.mxu0 0
          %732 = vmatprep.subr.bf16.mxu0 0
          %733 = vmatpush1.bf16.msra.mxu0 0
          %734 = vmatprep.subr.bf16.mxu0 0
          %735 = vmatpush1.bf16.msra.mxu0 0
          %736 = vmatprep.subr.bf16.mxu0 0
          %737 = vmatpush1.bf16.msra.mxu0 0
          %738 = vmatprep.subr.bf16.mxu0 0
          %739 = vmatpush1.bf16.msra.mxu0 0
          %740 = vmatprep.mubr.bf16.mxu0 0
          %741 = vmatmul.mubr.bf16.gmra.mrb[0].mxu0 %v706
          %v742 = vpop.f32.mrb[0].mxu0
          %v743 = vadd.f32 0.0, %v742
          %v744 = vpop.f32.mrb[0].mxu0
          %v745 = vpop.f32.mrb[0].mxu0
          %v746 = vpop.f32.mrb[0].mxu0
          %747 = vdwg.mxu0
          %v748 = vsub.f32 %v743, %v528
          %v749 = vadd.f32 %v748, %v586
          %v750 = vmax.f32 %v749, 0.0
          %v751 = vmax.f32 %v697, %v750
          %752 = vset.pattern.permute.xlu0 0
          %753 = vperm.xlu0 %752, %v512
          %v754 = vpop.permute.xlu0 %753
          %vm755 = vcmp.eq.s32.totalorder %v517, %v754
          %v756 = vsel %vm755, 1, 0
          %v757 = vcvt.s32.f32 %v756
          %v758 = vpack.c.bf16 %v757, %v757
          %v760 = vsel %vm537, %v758, 0
          %762 = vmatprep.subr.bf16.mxu0 0
          %763 = vmatpush1.bf16.msra.mxu0 %v524
          %764 = vmatprep.subr.bf16.mxu0 0
          %765 = vmatpush1.bf16.msra.mxu0 0
          %766 = vmatprep.subr.bf16.mxu0 0
          %767 = vmatpush1.bf16.msra.mxu0 0
          %768 = vmatprep.subr.bf16.mxu0 0
          %769 = vmatpush1.bf16.msra.mxu0 0
          %770 = vmatprep.subr.bf16.mxu0 0
          %771 = vmatpush1.bf16.msra.mxu0 0
          %772 = vmatprep.subr.bf16.mxu0 0
          %773 = vmatpush1.bf16.msra.mxu0 0
          %774 = vmatprep.subr.bf16.mxu0 0
          %775 = vmatpush1.bf16.msra.mxu0 0
          %776 = vmatprep.subr.bf16.mxu0 0
          %777 = vmatpush1.bf16.msra.mxu0 0
          %778 = vmatprep.subr.bf16.mxu0 0
          %779 = vmatpush1.bf16.msra.mxu0 0
          %780 = vmatprep.subr.bf16.mxu0 0
          %781 = vmatpush1.bf16.msra.mxu0 0
          %782 = vmatprep.subr.bf16.mxu0 0
          %783 = vmatpush1.bf16.msra.mxu0 0
          %784 = vmatprep.subr.bf16.mxu0 0
          %785 = vmatpush1.bf16.msra.mxu0 0
          %786 = vmatprep.subr.bf16.mxu0 0
          %787 = vmatpush1.bf16.msra.mxu0 0
          %788 = vmatprep.subr.bf16.mxu0 0
          %789 = vmatpush1.bf16.msra.mxu0 0
          %790 = vmatprep.subr.bf16.mxu0 0
          %791 = vmatpush1.bf16.msra.mxu0 0
          %792 = vmatprep.subr.bf16.mxu0 0
          %793 = vmatpush1.bf16.msra.mxu0 0
          %794 = vmatprep.mubr.bf16.mxu0 0
          %795 = vmatmul.mubr.bf16.gmra.mrb[0].mxu0 %v760
          %v796 = vpop.f32.mrb[0].mxu0
          %v797 = vadd.f32 0.0, %v796
          %v798 = vpop.f32.mrb[0].mxu0
          %v799 = vpop.f32.mrb[0].mxu0
          %v800 = vpop.f32.mrb[0].mxu0
          %801 = vdwg.mxu0
          %v802 = vsub.f32 %v797, %v528
          %v803 = vadd.f32 %v802, %v586
          %v804 = vmax.f32 %v803, 0.0
          %v805 = vmax.f32 %v751, %v804
          %806 = vset.pattern.permute.xlu0 0
          %807 = vperm.xlu0 %806, %v513
          %v808 = vpop.permute.xlu0 %807
          %vm809 = vcmp.eq.s32.totalorder %v517, %v808
          %v810 = vsel %vm809, 1, 0
          %v811 = vcvt.s32.f32 %v810
          %v812 = vpack.c.bf16 %v811, %v811
          %v814 = vsel %vm537, %v812, 0
          %816 = vmatprep.subr.bf16.mxu0 0
          %817 = vmatpush1.bf16.msra.mxu0 %v524
          %818 = vmatprep.subr.bf16.mxu0 0
          %819 = vmatpush1.bf16.msra.mxu0 0
          %820 = vmatprep.subr.bf16.mxu0 0
          %821 = vmatpush1.bf16.msra.mxu0 0
          %822 = vmatprep.subr.bf16.mxu0 0
          %823 = vmatpush1.bf16.msra.mxu0 0
          %824 = vmatprep.subr.bf16.mxu0 0
          %825 = vmatpush1.bf16.msra.mxu0 0
          %826 = vmatprep.subr.bf16.mxu0 0
          %827 = vmatpush1.bf16.msra.mxu0 0
          %828 = vmatprep.subr.bf16.mxu0 0
          %829 = vmatpush1.bf16.msra.mxu0 0
          %830 = vmatprep.subr.bf16.mxu0 0
          %831 = vmatpush1.bf16.msra.mxu0 0
          %832 = vmatprep.subr.bf16.mxu0 0
          %833 = vmatpush1.bf16.msra.mxu0 0
          %834 = vmatprep.subr.bf16.mxu0 0
          %835 = vmatpush1.bf16.msra.mxu0 0
          %836 = vmatprep.subr.bf16.mxu0 0
          %837 = vmatpush1.bf16.msra.mxu0 0
          %838 = vmatprep.subr.bf16.mxu0 0
          %839 = vmatpush1.bf16.msra.mxu0 0
          %840 = vmatprep.subr.bf16.mxu0 0
          %841 = vmatpush1.bf16.msra.mxu0 0
          %842 = vmatprep.subr.bf16.mxu0 0
          %843 = vmatpush1.bf16.msra.mxu0 0
          %844 = vmatprep.subr.bf16.mxu0 0
          %845 = vmatpush1.bf16.msra.mxu0 0
          %846 = vmatprep.subr.bf16.mxu0 0
          %847 = vmatpush1.bf16.msra.mxu0 0
          %848 = vmatprep.mubr.bf16.mxu0 0
          %849 = vmatmul.mubr.bf16.gmra.mrb[0].mxu0 %v814
          %v850 = vpop.f32.mrb[0].mxu0
          %v851 = vadd.f32 0.0, %v850
          %v852 = vpop.f32.mrb[0].mxu0
          %v853 = vpop.f32.mrb[0].mxu0
          %v854 = vpop.f32.mrb[0].mxu0
          %855 = vdwg.mxu0
          %v856 = vsub.f32 %v851, %v528
          %v857 = vadd.f32 %v856, %v586
          %v858 = vmax.f32 %v857, 0.0
          %v859 = vmax.f32 %v805, %v858
          %860 = vset.pattern.permute.xlu0 0
          %861 = vperm.xlu0 %860, %v514
          %v862 = vpop.permute.xlu0 %861
          %vm863 = vcmp.eq.s32.totalorder %v517, %v862
          %v864 = vsel %vm863, 1, 0
          %v865 = vcvt.s32.f32 %v864
          %v866 = vpack.c.bf16 %v865, %v865
          %v868 = vsel %vm537, %v866, 0
          %870 = vmatprep.subr.bf16.mxu0 0
          %871 = vmatpush1.bf16.msra.mxu0 %v524
          %872 = vmatprep.subr.bf16.mxu0 0
          %873 = vmatpush1.bf16.msra.mxu0 0
          %874 = vmatprep.subr.bf16.mxu0 0
          %875 = vmatpush1.bf16.msra.mxu0 0
          %876 = vmatprep.subr.bf16.mxu0 0
          %877 = vmatpush1.bf16.msra.mxu0 0
          %878 = vmatprep.subr.bf16.mxu0 0
          %879 = vmatpush1.bf16.msra.mxu0 0
          %880 = vmatprep.subr.bf16.mxu0 0
          %881 = vmatpush1.bf16.msra.mxu0 0
          %882 = vmatprep.subr.bf16.mxu0 0
          %883 = vmatpush1.bf16.msra.mxu0 0
          %884 = vmatprep.subr.bf16.mxu0 0
          %885 = vmatpush1.bf16.msra.mxu0 0
          %886 = vmatprep.subr.bf16.mxu0 0
          %887 = vmatpush1.bf16.msra.mxu0 0
          %888 = vmatprep.subr.bf16.mxu0 0
          %889 = vmatpush1.bf16.msra.mxu0 0
          %890 = vmatprep.subr.bf16.mxu0 0
          %891 = vmatpush1.bf16.msra.mxu0 0
          %892 = vmatprep.subr.bf16.mxu0 0
          %893 = vmatpush1.bf16.msra.mxu0 0
          %894 = vmatprep.subr.bf16.mxu0 0
          %895 = vmatpush1.bf16.msra.mxu0 0
          %896 = vmatprep.subr.bf16.mxu0 0
          %897 = vmatpush1.bf16.msra.mxu0 0
          %898 = vmatprep.subr.bf16.mxu0 0
          %899 = vmatpush1.bf16.msra.mxu0 0
          %900 = vmatprep.subr.bf16.mxu0 0
          %901 = vmatpush1.bf16.msra.mxu0 0
          %902 = vmatprep.mubr.bf16.mxu0 0
          %903 = vmatmul.mubr.bf16.gmra.mrb[0].mxu0 %v868
          %v904 = vpop.f32.mrb[0].mxu0
          %v905 = vadd.f32 0.0, %v904
          %v906 = vpop.f32.mrb[0].mxu0
          %v907 = vpop.f32.mrb[0].mxu0
          %v908 = vpop.f32.mrb[0].mxu0
          %909 = vdwg.mxu0
          %v910 = vsub.f32 %v905, %v528
          %v911 = vadd.f32 %v910, %v586
          %v912 = vmax.f32 %v911, 0.0
          %v913 = vmax.f32 %v859, %v912
          %914 = vset.pattern.permute.xlu0 0
          %915 = vperm.xlu0 %914, %v515
          %v916 = vpop.permute.xlu0 %915
          %vm917 = vcmp.eq.s32.totalorder %v517, %v916
          %v918 = vsel %vm917, 1, 0
          %v919 = vcvt.s32.f32 %v918
          %v920 = vpack.c.bf16 %v919, %v919
          %v922 = vsel %vm537, %v920, 0
          %924 = vmatprep.subr.bf16.mxu0 0
          %925 = vmatpush1.bf16.msra.mxu0 %v524
          %926 = vmatprep.subr.bf16.mxu0 0
          %927 = vmatpush1.bf16.msra.mxu0 0
          %928 = vmatprep.subr.bf16.mxu0 0
          %929 = vmatpush1.bf16.msra.mxu0 0
          %930 = vmatprep.subr.bf16.mxu0 0
          %931 = vmatpush1.bf16.msra.mxu0 0
          %932 = vmatprep.subr.bf16.mxu0 0
          %933 = vmatpush1.bf16.msra.mxu0 0
          %934 = vmatprep.subr.bf16.mxu0 0
          %935 = vmatpush1.bf16.msra.mxu0 0
          %936 = vmatprep.subr.bf16.mxu0 0
          %937 = vmatpush1.bf16.msra.mxu0 0
          %938 = vmatprep.subr.bf16.mxu0 0
          %939 = vmatpush1.bf16.msra.mxu0 0
          %940 = vmatprep.subr.bf16.mxu0 0
          %941 = vmatpush1.bf16.msra.mxu0 0
          %942 = vmatprep.subr.bf16.mxu0 0
          %943 = vmatpush1.bf16.msra.mxu0 0
          %944 = vmatprep.subr.bf16.mxu0 0
          %945 = vmatpush1.bf16.msra.mxu0 0
          %946 = vmatprep.subr.bf16.mxu0 0
          %947 = vmatpush1.bf16.msra.mxu0 0
          %948 = vmatprep.subr.bf16.mxu0 0
          %949 = vmatpush1.bf16.msra.mxu0 0
          %950 = vmatprep.subr.bf16.mxu0 0
          %951 = vmatpush1.bf16.msra.mxu0 0
          %952 = vmatprep.subr.bf16.mxu0 0
          %953 = vmatpush1.bf16.msra.mxu0 0
          %954 = vmatprep.subr.bf16.mxu0 0
          %955 = vmatpush1.bf16.msra.mxu0 0
          %956 = vmatprep.mubr.bf16.mxu0 0
          %957 = vmatmul.mubr.bf16.gmra.mrb[0].mxu0 %v922
          %v958 = vpop.f32.mrb[0].mxu0
          %v959 = vadd.f32 0.0, %v958
          %v960 = vpop.f32.mrb[0].mxu0
          %v961 = vpop.f32.mrb[0].mxu0
          %v962 = vpop.f32.mrb[0].mxu0
          %963 = vdwg.mxu0
          %v964 = vsub.f32 %v959, %v528
          %v965 = vadd.f32 %v964, %v586
          %v966 = vmax.f32 %v965, 0.0
          %v967 = vmax.f32 %v913, %v966
          %v968 = vld [vmem:[#allocation10] sm:$0xff]
          %v969 = vld [vmem:[#allocation10 + $0x8] sm:$0xff]
          %v970 = vld [vmem:[#allocation10 + $0x10] sm:$0xff]
          %v971 = vld [vmem:[#allocation10 + $0x18] sm:$0xff]
          %v972 = vld [vmem:[#allocation10 + $0x20] sm:$0xff]
          %v973 = vld [vmem:[#allocation10 + $0x28] sm:$0xff]
          %v974 = vld [vmem:[#allocation10 + $0x30] sm:$0xff]
          %v975 = vld [vmem:[#allocation10 + $0x38] sm:$0xff]
          %vm976 = vcmask 523264
          %v978 = vsel %vm976, %v967, 0
          %980 = vmatprep.subr.mxu0 0.0
          %981 = vmatpush1.msra.mxu0 %v968
          %982 = vmatprep.subr.mxu0 0.0
          %983 = vmatpush1.msra.mxu0 %v969
          %984 = vmatprep.subr.mxu0 0.0
          %985 = vmatpush1.msra.mxu0 %v970
          %986 = vmatprep.subr.mxu0 0.0
          %987 = vmatpush1.msra.mxu0 %v971
          %988 = vmatprep.subr.mxu0 0.0
          %989 = vmatpush1.msra.mxu0 %v972
          %990 = vmatprep.subr.mxu0 0.0
          %991 = vmatpush1.msra.mxu0 %v973
          %992 = vmatprep.subr.mxu0 0.0
          %993 = vmatpush1.msra.mxu0 %v974
          %994 = vmatprep.subr.mxu0 0.0
          %995 = vmatpush1.msra.mxu0 %v975
          %996 = vmatprep.subr.mxu0 0.0
          %997 = vmatpush1.msra.mxu0 0.0
          %998 = vmatprep.subr.mxu0 0.0
          %999 = vmatpush1.msra.mxu0 0.0
          %1000 = vmatprep.subr.mxu0 0.0
          %1001 = vmatpush1.msra.mxu0 0.0
          %1002 = vmatprep.subr.mxu0 0.0
          %1003 = vmatpush1.msra.mxu0 0.0
          %1004 = vmatprep.subr.mxu0 0.0
          %1005 = vmatpush1.msra.mxu0 0.0
          %1006 = vmatprep.subr.mxu0 0.0
          %1007 = vmatpush1.msra.mxu0 0.0
          %1008 = vmatprep.subr.mxu0 0.0
          %1009 = vmatpush1.msra.mxu0 0.0
          %1010 = vmatprep.subr.mxu0 0.0
          %1011 = vmatpush1.msra.mxu0 0.0
          %1012 = vmatprep.subr.mxu0 0.0
          %1013 = vmatpush1.msra.mxu0 0.0
          %1014 = vmatprep.subr.mxu0 0.0
          %1015 = vmatpush1.msra.mxu0 0.0
          %1016 = vmatprep.subr.mxu0 0.0
          %1017 = vmatpush1.msra.mxu0 0.0
          %1018 = vmatprep.subr.mxu0 0.0
          %1019 = vmatpush1.msra.mxu0 0.0
          %1020 = vmatprep.subr.mxu0 0.0
          %1021 = vmatpush1.msra.mxu0 0.0
          %1022 = vmatprep.subr.mxu0 0.0
          %1023 = vmatpush1.msra.mxu0 0.0
          %1024 = vmatprep.subr.mxu0 0.0
          %1025 = vmatpush1.msra.mxu0 0.0
          %1026 = vmatprep.subr.mxu0 0.0
          %1027 = vmatpush1.msra.mxu0 0.0
          %1028 = vmatprep.subr.mxu0 0.0
          %1029 = vmatpush1.msra.mxu0 0.0
          %1030 = vmatprep.subr.mxu0 0.0
          %1031 = vmatpush1.msra.mxu0 0.0
          %1032 = vmatprep.subr.mxu0 0.0
          %1033 = vmatpush1.msra.mxu0 0.0
          %1034 = vmatprep.subr.mxu0 0.0
          %1035 = vmatpush1.msra.mxu0 0.0
          %1036 = vmatprep.subr.mxu0 0.0
          %1037 = vmatpush1.msra.mxu0 0.0
          %1038 = vmatprep.subr.mxu0 0.0
          %1039 = vmatpush1.msra.mxu0 0.0
          %1040 = vmatprep.subr.mxu0 0.0
          %1041 = vmatpush1.msra.mxu0 0.0
          %1042 = vmatprep.subr.mxu0 0.0
          %1043 = vmatpush1.msra.mxu0 0.0
          %1044 = vmatprep.mubr.f32.mxu0 0.0
          %1045 = vmatmul.mubr.f32.gmra.mrb[0].mxu0 %v978
          %v1046 = vpop.f32.mrb[0].mxu0
          %v1047 = vadd.f32 0.0, %v1046
          %v1048 = vpop.f32.mrb[0].mxu0
          %1049 = vdwg.mxu0
          %s1050 = scalar_lea.vmem [#allocation2], %s507
          %1051 = vst [vmem:[%s1050] sm:$0xff] %v1047
        $region96: #{tpu_custom_call.1} parent=55 // pred_fallthru
          _
        %p1052 = scmp.eq.s32.totalorder %s38, 1
        // Predicated region
        $region97: #{tpu_custom_call.1} parent=55 // pred_check
          %p1053 = pneg %p1052
        $region98: #{tpu_custom_call.1} parent=55 // pred_check_branch
          %1055 = sbr.rel (%p1053) target = $region100
        $region99: #{tpu_custom_call.1} parent=55 // pred_region
          %p1056 = scmp.eq.s32.totalorder %s39, 0
          // Predicated region
          $region101: #{tpu_custom_call.1} parent=99 // pred_check
            %p1057 = pneg %p1056
          $region102: #{tpu_custom_call.1} parent=99 // pred_check_branch
            %1059 = sbr.rel (%p1057) target = $region104
          $region103: #{tpu_custom_call.1} parent=99 // pred_region
            %1060 = vst [vmem:[#allocation3] sm:$0x1] 0.0
          $region104: #{tpu_custom_call.1} parent=99 // pred_fallthru
            _
          %v1061 = vld [vmem:[#allocation2] sm:$0xff]
          %v1062 = vld [vmem:[#allocation2 + $0x8] sm:$0xff]
          %v1063 = vpack.c.bf16 %v1062, %v1061
          %s1064 = scalar_lea.vmem [#allocation2], %s507
          %v1065 = vld [vmem:[%s1064] sm:$0xff]
          %v1066 = vpack.c.bf16 %v1065, %v1065
          %v1067 = vunpack.c.l.bf16 %v1066
          %v1068 = vld [vmem:[#allocation12] sm:$0x1]
          %1069 = vset.pattern.permute.xlu0 0
          %1070 = vperm.xlu0 %1069, %v508
          %v1071 = vpop.permute.xlu0 %1070
          %vm1072 = vcmp.eq.s32.totalorder %v517, %v1071
          %v1073 = vsel %vm1072, 1, 0
          %v1074 = vcvt.s32.f32 %v1073
          %v1075 = vpack.c.bf16 %v1074, %v1074
          %vm1076 = vcmask 130048
          %v1078 = vsel %vm1076, %v1075, 0
          %1080 = vmatprep.subr.bf16.mxu0 0
          %1081 = vmatpush1.bf16.msra.mxu0 %v1063
          %1082 = vmatprep.subr.bf16.mxu0 0
          %1083 = vmatpush1.bf16.msra.mxu0 0
          %1084 = vmatprep.subr.bf16.mxu0 0
          %1085 = vmatpush1.bf16.msra.mxu0 0
          %1086 = vmatprep.subr.bf16.mxu0 0
          %1087 = vmatpush1.bf16.msra.mxu0 0
          %1088 = vmatprep.subr.bf16.mxu0 0
          %1089 = vmatpush1.bf16.msra.mxu0 0
          %1090 = vmatprep.subr.bf16.mxu0 0
          %1091 = vmatpush1.bf16.msra.mxu0 0
          %1092 = vmatprep.subr.bf16.mxu0 0
          %1093 = vmatpush1.bf16.msra.mxu0 0
          %1094 = vmatprep.subr.bf16.mxu0 0
          %1095 = vmatpush1.bf16.msra.mxu0 0
          %1096 = vmatprep.subr.bf16.mxu0 0
          %1097 = vmatpush1.bf16.msra.mxu0 0
          %1098 = vmatprep.subr.bf16.mxu0 0
          %1099 = vmatpush1.bf16.msra.mxu0 0
          %1100 = vmatprep.subr.bf16.mxu0 0
          %1101 = vmatpush1.bf16.msra.mxu0 0
          %1102 = vmatprep.subr.bf16.mxu0 0
          %1103 = vmatpush1.bf16.msra.mxu0 0
          %1104 = vmatprep.subr.bf16.mxu0 0
          %1105 = vmatpush1.bf16.msra.mxu0 0
          %1106 = vmatprep.subr.bf16.mxu0 0
          %1107 = vmatpush1.bf16.msra.mxu0 0
          %1108 = vmatprep.subr.bf16.mxu0 0
          %1109 = vmatpush1.bf16.msra.mxu0 0
          %1110 = vmatprep.subr.bf16.mxu0 0
          %1111 = vmatpush1.bf16.msra.mxu0 0
          %1112 = vmatprep.mubr.bf16.mxu0 0
          %1113 = vmatmul.mubr.bf16.gmra.mrb[0].mxu0 %v1078
          %v1114 = vpop.f32.mrb[0].mxu0
          %v1115 = vadd.f32 0.0, %v1114
          %v1116 = vpop.f32.mrb[0].mxu0
          %v1117 = vpop.f32.mrb[0].mxu0
          %v1118 = vpop.f32.mrb[0].mxu0
          %1119 = vdwg.mxu0
          %v1120 = vsub.f32 %v1115, %v1067
          %v1122 = vlaneseq
          %v1123 = vshrl.u32 %v1122, 7
          %v1124 = vsub.s32 0, %v1123
          %v1125 = vrot.slane %v1068, %v1124
          %v1127 = vadd.f32 %v1120, %v1125
          %v1128 = vmax.f32 %v1127, 0.0
          %1129 = vset.pattern.permute.xlu0 0
          %1130 = vperm.xlu0 %1129, %v509
          %v1131 = vpop.permute.xlu0 %1130
          %vm1132 = vcmp.eq.s32.totalorder %v517, %v1131
          %v1133 = vsel %vm1132, 1, 0
          %v1134 = vcvt.s32.f32 %v1133
          %v1135 = vpack.c.bf16 %v1134, %v1134
          %v1137 = vsel %vm1076, %v1135, 0
          %1139 = vmatprep.subr.bf16.mxu0 0
          %1140 = vmatpush1.bf16.msra.mxu0 %v1063
          %1141 = vmatprep.subr.bf16.mxu0 0
          %1142 = vmatpush1.bf16.msra.mxu0 0
          %1143 = vmatprep.subr.bf16.mxu0 0
          %1144 = vmatpush1.bf16.msra.mxu0 0
          %1145 = vmatprep.subr.bf16.mxu0 0
          %1146 = vmatpush1.bf16.msra.mxu0 0
          %1147 = vmatprep.subr.bf16.mxu0 0
          %1148 = vmatpush1.bf16.msra.mxu0 0
          %1149 = vmatprep.subr.bf16.mxu0 0
          %1150 = vmatpush1.bf16.msra.mxu0 0
          %1151 = vmatprep.subr.bf16.mxu0 0
          %1152 = vmatpush1.bf16.msra.mxu0 0
          %1153 = vmatprep.subr.bf16.mxu0 0
          %1154 = vmatpush1.bf16.msra.mxu0 0
          %1155 = vmatprep.subr.bf16.mxu0 0
          %1156 = vmatpush1.bf16.msra.mxu0 0
          %1157 = vmatprep.subr.bf16.mxu0 0
          %1158 = vmatpush1.bf16.msra.mxu0 0
          %1159 = vmatprep.subr.bf16.mxu0 0
          %1160 = vmatpush1.bf16.msra.mxu0 0
          %1161 = vmatprep.subr.bf16.mxu0 0
          %1162 = vmatpush1.bf16.msra.mxu0 0
          %1163 = vmatprep.subr.bf16.mxu0 0
          %1164 = vmatpush1.bf16.msra.mxu0 0
          %1165 = vmatprep.subr.bf16.mxu0 0
          %1166 = vmatpush1.bf16.msra.mxu0 0
          %1167 = vmatprep.subr.bf16.mxu0 0
          %1168 = vmatpush1.bf16.msra.mxu0 0
          %1169 = vmatprep.subr.bf16.mxu0 0
          %1170 = vmatpush1.bf16.msra.mxu0 0
          %1171 = vmatprep.mubr.bf16.mxu0 0
          %1172 = vmatmul.mubr.bf16.gmra.mrb[0].mxu0 %v1137
          %v1173 = vpop.f32.mrb[0].mxu0
          %v1174 = vadd.f32 0.0, %v1173
          %v1175 = vpop.f32.mrb[0].mxu0
          %v1176 = vpop.f32.mrb[0].mxu0
          %v1177 = vpop.f32.mrb[0].mxu0
          %1178 = vdwg.mxu0
          %v1179 = vsub.f32 %v1174, %v1067
          %v1180 = vadd.f32 %v1179, %v1125
          %v1181 = vmax.f32 %v1180, 0.0
          %v1182 = vmax.f32 %v1128, %v1181
          %1183 = vset.pattern.permute.xlu0 0
          %1184 = vperm.xlu0 %1183, %v510
          %v1185 = vpop.permute.xlu0 %1184
          %vm1186 = vcmp.eq.s32.totalorder %v517, %v1185
          %v1187 = vsel %vm1186, 1, 0
          %v1188 = vcvt.s32.f32 %v1187
          %v1189 = vpack.c.bf16 %v1188, %v1188
          %v1191 = vsel %vm1076, %v1189, 0
          %1193 = vmatprep.subr.bf16.mxu0 0
          %1194 = vmatpush1.bf16.msra.mxu0 %v1063
          %1195 = vmatprep.subr.bf16.mxu0 0
          %1196 = vmatpush1.bf16.msra.mxu0 0
          %1197 = vmatprep.subr.bf16.mxu0 0
          %1198 = vmatpush1.bf16.msra.mxu0 0
          %1199 = vmatprep.subr.bf16.mxu0 0
          %1200 = vmatpush1.bf16.msra.mxu0 0
          %1201 = vmatprep.subr.bf16.mxu0 0
          %1202 = vmatpush1.bf16.msra.mxu0 0
          %1203 = vmatprep.subr.bf16.mxu0 0
          %1204 = vmatpush1.bf16.msra.mxu0 0
          %1205 = vmatprep.subr.bf16.mxu0 0
          %1206 = vmatpush1.bf16.msra.mxu0 0
          %1207 = vmatprep.subr.bf16.mxu0 0
          %1208 = vmatpush1.bf16.msra.mxu0 0
          %1209 = vmatprep.subr.bf16.mxu0 0
          %1210 = vmatpush1.bf16.msra.mxu0 0
          %1211 = vmatprep.subr.bf16.mxu0 0
          %1212 = vmatpush1.bf16.msra.mxu0 0
          %1213 = vmatprep.subr.bf16.mxu0 0
          %1214 = vmatpush1.bf16.msra.mxu0 0
          %1215 = vmatprep.subr.bf16.mxu0 0
          %1216 = vmatpush1.bf16.msra.mxu0 0
          %1217 = vmatprep.subr.bf16.mxu0 0
          %1218 = vmatpush1.bf16.msra.mxu0 0
          %1219 = vmatprep.subr.bf16.mxu0 0
          %1220 = vmatpush1.bf16.msra.mxu0 0
          %1221 = vmatprep.subr.bf16.mxu0 0
          %1222 = vmatpush1.bf16.msra.mxu0 0
          %1223 = vmatprep.subr.bf16.mxu0 0
          %1224 = vmatpush1.bf16.msra.mxu0 0
          %1225 = vmatprep.mubr.bf16.mxu0 0
          %1226 = vmatmul.mubr.bf16.gmra.mrb[0].mxu0 %v1191
          %v1227 = vpop.f32.mrb[0].mxu0
          %v1228 = vadd.f32 0.0, %v1227
          %v1229 = vpop.f32.mrb[0].mxu0
          %v1230 = vpop.f32.mrb[0].mxu0
          %v1231 = vpop.f32.mrb[0].mxu0
          %1232 = vdwg.mxu0
          %v1233 = vsub.f32 %v1228, %v1067
          %v1234 = vadd.f32 %v1233, %v1125
          %v1235 = vmax.f32 %v1234, 0.0
          %v1236 = vmax.f32 %v1182, %v1235
          %1237 = vset.pattern.permute.xlu0 0
          %1238 = vperm.xlu0 %1237, %v511
          %v1239 = vpop.permute.xlu0 %1238
          %vm1240 = vcmp.eq.s32.totalorder %v517, %v1239
          %v1241 = vsel %vm1240, 1, 0
          %v1242 = vcvt.s32.f32 %v1241
          %v1243 = vpack.c.bf16 %v1242, %v1242
          %v1245 = vsel %vm1076, %v1243, 0
          %1247 = vmatprep.subr.bf16.mxu0 0
          %1248 = vmatpush1.bf16.msra.mxu0 %v1063
          %1249 = vmatprep.subr.bf16.mxu0 0
          %1250 = vmatpush1.bf16.msra.mxu0 0
          %1251 = vmatprep.subr.bf16.mxu0 0
          %1252 = vmatpush1.bf16.msra.mxu0 0
          %1253 = vmatprep.subr.bf16.mxu0 0
          %1254 = vmatpush1.bf16.msra.mxu0 0
          %1255 = vmatprep.subr.bf16.mxu0 0
          %1256 = vmatpush1.bf16.msra.mxu0 0
          %1257 = vmatprep.subr.bf16.mxu0 0
          %1258 = vmatpush1.bf16.msra.mxu0 0
          %1259 = vmatprep.subr.bf16.mxu0 0
          %1260 = vmatpush1.bf16.msra.mxu0 0
          %1261 = vmatprep.subr.bf16.mxu0 0
          %1262 = vmatpush1.bf16.msra.mxu0 0
          %1263 = vmatprep.subr.bf16.mxu0 0
          %1264 = vmatpush1.bf16.msra.mxu0 0
          %1265 = vmatprep.subr.bf16.mxu0 0
          %1266 = vmatpush1.bf16.msra.mxu0 0
          %1267 = vmatprep.subr.bf16.mxu0 0
          %1268 = vmatpush1.bf16.msra.mxu0 0
          %1269 = vmatprep.subr.bf16.mxu0 0
          %1270 = vmatpush1.bf16.msra.mxu0 0
          %1271 = vmatprep.subr.bf16.mxu0 0
          %1272 = vmatpush1.bf16.msra.mxu0 0
          %1273 = vmatprep.subr.bf16.mxu0 0
          %1274 = vmatpush1.bf16.msra.mxu0 0
          %1275 = vmatprep.subr.bf16.mxu0 0
          %1276 = vmatpush1.bf16.msra.mxu0 0
          %1277 = vmatprep.subr.bf16.mxu0 0
          %1278 = vmatpush1.bf16.msra.mxu0 0
          %1279 = vmatprep.mubr.bf16.mxu0 0
          %1280 = vmatmul.mubr.bf16.gmra.mrb[0].mxu0 %v1245
          %v1281 = vpop.f32.mrb[0].mxu0
          %v1282 = vadd.f32 0.0, %v1281
          %v1283 = vpop.f32.mrb[0].mxu0
          %v1284 = vpop.f32.mrb[0].mxu0
          %v1285 = vpop.f32.mrb[0].mxu0
          %1286 = vdwg.mxu0
          %v1287 = vsub.f32 %v1282, %v1067
          %v1288 = vadd.f32 %v1287, %v1125
          %v1289 = vmax.f32 %v1288, 0.0
          %v1290 = vmax.f32 %v1236, %v1289
          %1291 = vset.pattern.permute.xlu0 0
          %1292 = vperm.xlu0 %1291, %v512
          %v1293 = vpop.permute.xlu0 %1292
          %vm1294 = vcmp.eq.s32.totalorder %v517, %v1293
          %v1295 = vsel %vm1294, 1, 0
          %v1296 = vcvt.s32.f32 %v1295
          %v1297 = vpack.c.bf16 %v1296, %v1296
          %v1299 = vsel %vm1076, %v1297, 0
          %1301 = vmatprep.subr.bf16.mxu0 0
          %1302 = vmatpush1.bf16.msra.mxu0 %v1063
          %1303 = vmatprep.subr.bf16.mxu0 0
          %1304 = vmatpush1.bf16.msra.mxu0 0
          %1305 = vmatprep.subr.bf16.mxu0 0
          %1306 = vmatpush1.bf16.msra.mxu0 0
          %1307 = vmatprep.subr.bf16.mxu0 0
          %1308 = vmatpush1.bf16.msra.mxu0 0
          %1309 = vmatprep.subr.bf16.mxu0 0
          %1310 = vmatpush1.bf16.msra.mxu0 0
          %1311 = vmatprep.subr.bf16.mxu0 0
          %1312 = vmatpush1.bf16.msra.mxu0 0
          %1313 = vmatprep.subr.bf16.mxu0 0
          %1314 = vmatpush1.bf16.msra.mxu0 0
          %1315 = vmatprep.subr.bf16.mxu0 0
          %1316 = vmatpush1.bf16.msra.mxu0 0
          %1317 = vmatprep.subr.bf16.mxu0 0
          %1318 = vmatpush1.bf16.msra.mxu0 0
          %1319 = vmatprep.subr.bf16.mxu0 0
          %1320 = vmatpush1.bf16.msra.mxu0 0
          %1321 = vmatprep.subr.bf16.mxu0 0
          %1322 = vmatpush1.bf16.msra.mxu0 0
          %1323 = vmatprep.subr.bf16.mxu0 0
          %1324 = vmatpush1.bf16.msra.mxu0 0
          %1325 = vmatprep.subr.bf16.mxu0 0
          %1326 = vmatpush1.bf16.msra.mxu0 0
          %1327 = vmatprep.subr.bf16.mxu0 0
          %1328 = vmatpush1.bf16.msra.mxu0 0
          %1329 = vmatprep.subr.bf16.mxu0 0
          %1330 = vmatpush1.bf16.msra.mxu0 0
          %1331 = vmatprep.subr.bf16.mxu0 0
          %1332 = vmatpush1.bf16.msra.mxu0 0
          %1333 = vmatprep.mubr.bf16.mxu0 0
          %1334 = vmatmul.mubr.bf16.gmra.mrb[0].mxu0 %v1299
          %v1335 = vpop.f32.mrb[0].mxu0
          %v1336 = vadd.f32 0.0, %v1335
          %v1337 = vpop.f32.mrb[0].mxu0
          %v1338 = vpop.f32.mrb[0].mxu0
          %v1339 = vpop.f32.mrb[0].mxu0
          %1340 = vdwg.mxu0
          %v1341 = vsub.f32 %v1336, %v1067
          %v1342 = vadd.f32 %v1341, %v1125
          %v1343 = vmax.f32 %v1342, 0.0
          %v1344 = vmax.f32 %v1290, %v1343
          %1345 = vset.pattern.permute.xlu0 0
          %1346 = vperm.xlu0 %1345, %v513
          %v1347 = vpop.permute.xlu0 %1346
          %vm1348 = vcmp.eq.s32.totalorder %v517, %v1347
          %v1349 = vsel %vm1348, 1, 0
          %v1350 = vcvt.s32.f32 %v1349
          %v1351 = vpack.c.bf16 %v1350, %v1350
          %v1353 = vsel %vm1076, %v1351, 0
          %1355 = vmatprep.subr.bf16.mxu0 0
          %1356 = vmatpush1.bf16.msra.mxu0 %v1063
          %1357 = vmatprep.subr.bf16.mxu0 0
          %1358 = vmatpush1.bf16.msra.mxu0 0
          %1359 = vmatprep.subr.bf16.mxu0 0
          %1360 = vmatpush1.bf16.msra.mxu0 0
          %1361 = vmatprep.subr.bf16.mxu0 0
          %1362 = vmatpush1.bf16.msra.mxu0 0
          %1363 = vmatprep.subr.bf16.mxu0 0
          %1364 = vmatpush1.bf16.msra.mxu0 0
          %1365 = vmatprep.subr.bf16.mxu0 0
          %1366 = vmatpush1.bf16.msra.mxu0 0
          %1367 = vmatprep.subr.bf16.mxu0 0
          %1368 = vmatpush1.bf16.msra.mxu0 0
          %1369 = vmatprep.subr.bf16.mxu0 0
          %1370 = vmatpush1.bf16.msra.mxu0 0
          %1371 = vmatprep.subr.bf16.mxu0 0
          %1372 = vmatpush1.bf16.msra.mxu0 0
          %1373 = vmatprep.subr.bf16.mxu0 0
          %1374 = vmatpush1.bf16.msra.mxu0 0
          %1375 = vmatprep.subr.bf16.mxu0 0
          %1376 = vmatpush1.bf16.msra.mxu0 0
          %1377 = vmatprep.subr.bf16.mxu0 0
          %1378 = vmatpush1.bf16.msra.mxu0 0
          %1379 = vmatprep.subr.bf16.mxu0 0
          %1380 = vmatpush1.bf16.msra.mxu0 0
          %1381 = vmatprep.subr.bf16.mxu0 0
          %1382 = vmatpush1.bf16.msra.mxu0 0
          %1383 = vmatprep.subr.bf16.mxu0 0
          %1384 = vmatpush1.bf16.msra.mxu0 0
          %1385 = vmatprep.subr.bf16.mxu0 0
          %1386 = vmatpush1.bf16.msra.mxu0 0
          %1387 = vmatprep.mubr.bf16.mxu0 0
          %1388 = vmatmul.mubr.bf16.gmra.mrb[0].mxu0 %v1353
          %v1389 = vpop.f32.mrb[0].mxu0
          %v1390 = vadd.f32 0.0, %v1389
          %v1391 = vpop.f32.mrb[0].mxu0
          %v1392 = vpop.f32.mrb[0].mxu0
          %v1393 = vpop.f32.mrb[0].mxu0
          %1394 = vdwg.mxu0
          %v1395 = vsub.f32 %v1390, %v1067
          %v1396 = vadd.f32 %v1395, %v1125
          %v1397 = vmax.f32 %v1396, 0.0
          %v1398 = vmax.f32 %v1344, %v1397
          %1399 = vset.pattern.permute.xlu0 0
          %1400 = vperm.xlu0 %1399, %v514
          %v1401 = vpop.permute.xlu0 %1400
          %vm1402 = vcmp.eq.s32.totalorder %v517, %v1401
          %v1403 = vsel %vm1402, 1, 0
          %v1404 = vcvt.s32.f32 %v1403
          %v1405 = vpack.c.bf16 %v1404, %v1404
          %v1407 = vsel %vm1076, %v1405, 0
          %1409 = vmatprep.subr.bf16.mxu0 0
          %1410 = vmatpush1.bf16.msra.mxu0 %v1063
          %1411 = vmatprep.subr.bf16.mxu0 0
          %1412 = vmatpush1.bf16.msra.mxu0 0
          %1413 = vmatprep.subr.bf16.mxu0 0
          %1414 = vmatpush1.bf16.msra.mxu0 0
          %1415 = vmatprep.subr.bf16.mxu0 0
          %1416 = vmatpush1.bf16.msra.mxu0 0
          %1417 = vmatprep.subr.bf16.mxu0 0
          %1418 = vmatpush1.bf16.msra.mxu0 0
          %1419 = vmatprep.subr.bf16.mxu0 0
          %1420 = vmatpush1.bf16.msra.mxu0 0
          %1421 = vmatprep.subr.bf16.mxu0 0
          %1422 = vmatpush1.bf16.msra.mxu0 0
          %1423 = vmatprep.subr.bf16.mxu0 0
          %1424 = vmatpush1.bf16.msra.mxu0 0
          %1425 = vmatprep.subr.bf16.mxu0 0
          %1426 = vmatpush1.bf16.msra.mxu0 0
          %1427 = vmatprep.subr.bf16.mxu0 0
          %1428 = vmatpush1.bf16.msra.mxu0 0
          %1429 = vmatprep.subr.bf16.mxu0 0
          %1430 = vmatpush1.bf16.msra.mxu0 0
          %1431 = vmatprep.subr.bf16.mxu0 0
          %1432 = vmatpush1.bf16.msra.mxu0 0
          %1433 = vmatprep.subr.bf16.mxu0 0
          %1434 = vmatpush1.bf16.msra.mxu0 0
          %1435 = vmatprep.subr.bf16.mxu0 0
          %1436 = vmatpush1.bf16.msra.mxu0 0
          %1437 = vmatprep.subr.bf16.mxu0 0
          %1438 = vmatpush1.bf16.msra.mxu0 0
          %1439 = vmatprep.subr.bf16.mxu0 0
          %1440 = vmatpush1.bf16.msra.mxu0 0
          %1441 = vmatprep.mubr.bf16.mxu0 0
          %1442 = vmatmul.mubr.bf16.gmra.mrb[0].mxu0 %v1407
          %v1443 = vpop.f32.mrb[0].mxu0
          %v1444 = vadd.f32 0.0, %v1443
          %v1445 = vpop.f32.mrb[0].mxu0
          %v1446 = vpop.f32.mrb[0].mxu0
          %v1447 = vpop.f32.mrb[0].mxu0
          %1448 = vdwg.mxu0
          %v1449 = vsub.f32 %v1444, %v1067
          %v1450 = vadd.f32 %v1449, %v1125
          %v1451 = vmax.f32 %v1450, 0.0
          %v1452 = vmax.f32 %v1398, %v1451
          %1453 = vset.pattern.permute.xlu0 0
          %1454 = vperm.xlu0 %1453, %v515
          %v1455 = vpop.permute.xlu0 %1454
          %vm1456 = vcmp.eq.s32.totalorder %v517, %v1455
          %v1457 = vsel %vm1456, 1, 0
          %v1458 = vcvt.s32.f32 %v1457
          %v1459 = vpack.c.bf16 %v1458, %v1458
          %v1461 = vsel %vm1076, %v1459, 0
          %1463 = vmatprep.subr.bf16.mxu0 0
          %1464 = vmatpush1.bf16.msra.mxu0 %v1063
          %1465 = vmatprep.subr.bf16.mxu0 0
          %1466 = vmatpush1.bf16.msra.mxu0 0
          %1467 = vmatprep.subr.bf16.mxu0 0
          %1468 = vmatpush1.bf16.msra.mxu0 0
          %1469 = vmatprep.subr.bf16.mxu0 0
          %1470 = vmatpush1.bf16.msra.mxu0 0
          %1471 = vmatprep.subr.bf16.mxu0 0
          %1472 = vmatpush1.bf16.msra.mxu0 0
          %1473 = vmatprep.subr.bf16.mxu0 0
          %1474 = vmatpush1.bf16.msra.mxu0 0
          %1475 = vmatprep.subr.bf16.mxu0 0
          %1476 = vmatpush1.bf16.msra.mxu0 0
          %1477 = vmatprep.subr.bf16.mxu0 0
          %1478 = vmatpush1.bf16.msra.mxu0 0
          %1479 = vmatprep.subr.bf16.mxu0 0
          %1480 = vmatpush1.bf16.msra.mxu0 0
          %1481 = vmatprep.subr.bf16.mxu0 0
          %1482 = vmatpush1.bf16.msra.mxu0 0
          %1483 = vmatprep.subr.bf16.mxu0 0
          %1484 = vmatpush1.bf16.msra.mxu0 0
          %1485 = vmatprep.subr.bf16.mxu0 0
          %1486 = vmatpush1.bf16.msra.mxu0 0
          %1487 = vmatprep.subr.bf16.mxu0 0
          %1488 = vmatpush1.bf16.msra.mxu0 0
          %1489 = vmatprep.subr.bf16.mxu0 0
          %1490 = vmatpush1.bf16.msra.mxu0 0
          %1491 = vmatprep.subr.bf16.mxu0 0
          %1492 = vmatpush1.bf16.msra.mxu0 0
          %1493 = vmatprep.subr.bf16.mxu0 0
          %1494 = vmatpush1.bf16.msra.mxu0 0
          %1495 = vmatprep.mubr.bf16.mxu0 0
          %1496 = vmatmul.mubr.bf16.gmra.mrb[0].mxu0 %v1461
          %v1497 = vpop.f32.mrb[0].mxu0
          %v1498 = vadd.f32 0.0, %v1497
          %v1499 = vpop.f32.mrb[0].mxu0
          %v1500 = vpop.f32.mrb[0].mxu0
          %v1501 = vpop.f32.mrb[0].mxu0
          %1502 = vdwg.mxu0
          %v1503 = vsub.f32 %v1498, %v1067
          %v1504 = vadd.f32 %v1503, %v1125
          %v1505 = vmax.f32 %v1504, 0.0
          %v1506 = vmax.f32 %v1452, %v1505
          %v1507 = vld [vmem:[#allocation3] sm:$0x1]
          %v1508 = vrot.slane %v1506, 4
          %v1509 = vmax.f32 %v1506, %v1508
          %v1510 = vrot.slane %v1509, 2
          %v1511 = vmax.f32 %v1509, %v1510
          %v1512 = vrot.slane %v1511, 1
          %v1513 = vmax.f32 %v1511, %v1512
          %v1514 = vmax.f32 %v1507, %v1513
          %1515 = vst [vmem:[#allocation3] sm:$0x1] %v1514
          %p1516 = scmp.eq.s32.totalorder %s39, 1
          // Predicated region
          $region105: #{tpu_custom_call.1} parent=99 // pred_check
            %p1517 = pneg %p1516
          $region106: #{tpu_custom_call.1} parent=99 // pred_check_branch
            %1519 = sbr.rel (%p1517) target = $region108
          $region107: #{tpu_custom_call.1} parent=99 // pred_region
            %v1520 = vld [vmem:[#allocation3] sm:$0x1]
            %v1521 = vld [vmem:[#allocation13] sm:$0xff]
            %v1522 = vld [vmem:[#allocation13 + $0x8] sm:$0xff]
            %v1523 = vld [vmem:[#allocation13 + $0x10] sm:$0xff]
            %v1524 = vld [vmem:[#allocation13 + $0x18] sm:$0xff]
            %v1525 = vld [vmem:[#allocation13 + $0x20] sm:$0xff]
            %v1526 = vld [vmem:[#allocation13 + $0x28] sm:$0xff]
            %v1527 = vld [vmem:[#allocation13 + $0x30] sm:$0xff]
            %v1528 = vld [vmem:[#allocation13 + $0x38] sm:$0xff]
            %v1529 = vld [vmem:[#allocation13 + $0x40] sm:$0xff]
            %v1530 = vld [vmem:[#allocation13 + $0x48] sm:$0xff]
            %v1531 = vld [vmem:[#allocation13 + $0x50] sm:$0xff]
            %v1532 = vld [vmem:[#allocation13 + $0x58] sm:$0xff]
            %v1533 = vld [vmem:[#allocation13 + $0x60] sm:$0xff]
            %v1534 = vld [vmem:[#allocation13 + $0x68] sm:$0xff]
            %v1535 = vld [vmem:[#allocation13 + $0x70] sm:$0xff]
            %v1536 = vld [vmem:[#allocation13 + $0x78] sm:$0xff]
            %v1537 = vld [vmem:[#allocation15] sm:$0x1]
            %1538 = vmatprep.subr.mxu0 0.0
            %1539 = vmatpush1.msra.mxu0 %v1521
            %1540 = vmatprep.subr.mxu0 0.0
            %1541 = vmatpush1.msra.mxu0 %v1522
            %1542 = vmatprep.subr.mxu0 0.0
            %1543 = vmatpush1.msra.mxu0 %v1523
            %1544 = vmatprep.subr.mxu0 0.0
            %1545 = vmatpush1.msra.mxu0 %v1524
            %1546 = vmatprep.subr.mxu0 0.0
            %1547 = vmatpush1.msra.mxu0 %v1525
            %1548 = vmatprep.subr.mxu0 0.0
            %1549 = vmatpush1.msra.mxu0 %v1526
            %1550 = vmatprep.subr.mxu0 0.0
            %1551 = vmatpush1.msra.mxu0 %v1527
            %1552 = vmatprep.subr.mxu0 0.0
            %1553 = vmatpush1.msra.mxu0 %v1528
            %1554 = vmatprep.subr.mxu0 0.0
            %1555 = vmatpush1.msra.mxu0 %v1529
            %1556 = vmatprep.subr.mxu0 0.0
            %1557 = vmatpush1.msra.mxu0 %v1530
            %1558 = vmatprep.subr.mxu0 0.0
            %1559 = vmatpush1.msra.mxu0 %v1531
            %1560 = vmatprep.subr.mxu0 0.0
            %1561 = vmatpush1.msra.mxu0 %v1532
            %1562 = vmatprep.subr.mxu0 0.0
            %1563 = vmatpush1.msra.mxu0 %v1533
            %1564 = vmatprep.subr.mxu0 0.0
            %1565 = vmatpush1.msra.mxu0 %v1534
            %1566 = vmatprep.subr.mxu0 0.0
            %1567 = vmatpush1.msra.mxu0 %v1535
            %1568 = vmatprep.subr.mxu0 0.0
            %1569 = vmatpush1.msra.mxu0 %v1536
            %1570 = vmatprep.subr.mxu0 0.0
            %1571 = vmatpush1.msra.mxu0 0.0
            %1572 = vmatprep.subr.mxu0 0.0
            %1573 = vmatpush1.msra.mxu0 0.0
            %1574 = vmatprep.subr.mxu0 0.0
            %1575 = vmatpush1.msra.mxu0 0.0
            %1576 = vmatprep.subr.mxu0 0.0
            %1577 = vmatpush1.msra.mxu0 0.0
            %1578 = vmatprep.subr.mxu0 0.0
            %1579 = vmatpush1.msra.mxu0 0.0
            %1580 = vmatprep.subr.mxu0 0.0
            %1581 = vmatpush1.msra.mxu0 0.0
            %1582 = vmatprep.subr.mxu0 0.0
            %1583 = vmatpush1.msra.mxu0 0.0
            %1584 = vmatprep.subr.mxu0 0.0
            %1585 = vmatpush1.msra.mxu0 0.0
            %1586 = vmatprep.subr.mxu0 0.0
            %1587 = vmatpush1.msra.mxu0 0.0
            %1588 = vmatprep.subr.mxu0 0.0
            %1589 = vmatpush1.msra.mxu0 0.0
            %1590 = vmatprep.subr.mxu0 0.0
            %1591 = vmatpush1.msra.mxu0 0.0
            %1592 = vmatprep.subr.mxu0 0.0
            %1593 = vmatpush1.msra.mxu0 0.0
            %1594 = vmatprep.subr.mxu0 0.0
            %1595 = vmatpush1.msra.mxu0 0.0
            %1596 = vmatprep.subr.mxu0 0.0
            %1597 = vmatpush1.msra.mxu0 0.0
            %1598 = vmatprep.subr.mxu0 0.0
            %1599 = vmatpush1.msra.mxu0 0.0
            %1600 = vmatprep.subr.mxu0 0.0
            %1601 = vmatpush1.msra.mxu0 0.0
            %1602 = vmatprep.mubr.f32.mxu0 0.0
            %1603 = vmatmul.mubr.f32.gmra.mrb[0].mxu0 %v1520
            %v1604 = vpop.f32.mrb[0].mxu0
            %v1605 = vadd.f32 %v1537, %v1604
            %v1606 = vpop.f32.mrb[0].mxu0
            %1607 = vdwg.mxu0
            %v1608 = vmax.f32 %v1605, 0.0
            %v1609 = vld [vmem:[#allocation16] sm:$0xff]
            %v1610 = vld [vmem:[#allocation16 + $0x8] sm:$0xff]
            %v1611 = vld [vmem:[#allocation16 + $0x10] sm:$0xff]
            %v1612 = vld [vmem:[#allocation16 + $0x18] sm:$0xff]
            %v1613 = vld [vmem:[#allocation16 + $0x20] sm:$0xff]
            %v1614 = vld [vmem:[#allocation16 + $0x28] sm:$0xff]
            %v1615 = vld [vmem:[#allocation16 + $0x30] sm:$0xff]
            %v1616 = vld [vmem:[#allocation16 + $0x38] sm:$0xff]
            %v1617 = vld [vmem:[#allocation18] sm:$0x1]
            %vm1618 = vcmask 523264
            %v1620 = vsel %vm1618, %v1608, 0
            %1622 = vmatprep.subr.mxu0 0.0
            %1623 = vmatpush1.msra.mxu0 %v1609
            %1624 = vmatprep.subr.mxu0 0.0
            %1625 = vmatpush1.msra.mxu0 %v1610
            %1626 = vmatprep.subr.mxu0 0.0
            %1627 = vmatpush1.msra.mxu0 %v1611
            %1628 = vmatprep.subr.mxu0 0.0
            %1629 = vmatpush1.msra.mxu0 %v1612
            %1630 = vmatprep.subr.mxu0 0.0
            %1631 = vmatpush1.msra.mxu0 %v1613
            %1632 = vmatprep.subr.mxu0 0.0
            %1633 = vmatpush1.msra.mxu0 %v1614
            %1634 = vmatprep.subr.mxu0 0.0
            %1635 = vmatpush1.msra.mxu0 %v1615
            %1636 = vmatprep.subr.mxu0 0.0
            %1637 = vmatpush1.msra.mxu0 %v1616
            %1638 = vmatprep.subr.mxu0 0.0
            %1639 = vmatpush1.msra.mxu0 0.0
            %1640 = vmatprep.subr.mxu0 0.0
            %1641 = vmatpush1.msra.mxu0 0.0
            %1642 = vmatprep.subr.mxu0 0.0
            %1643 = vmatpush1.msra.mxu0 0.0
            %1644 = vmatprep.subr.mxu0 0.0
            %1645 = vmatpush1.msra.mxu0 0.0
            %1646 = vmatprep.subr.mxu0 0.0
            %1647 = vmatpush1.msra.mxu0 0.0
            %1648 = vmatprep.subr.mxu0 0.0
            %1649 = vmatpush1.msra.mxu0 0.0
            %1650 = vmatprep.subr.mxu0 0.0
            %1651 = vmatpush1.msra.mxu0 0.0
            %1652 = vmatprep.subr.mxu0 0.0
            %1653 = vmatpush1.msra.mxu0 0.0
            %1654 = vmatprep.subr.mxu0 0.0
            %1655 = vmatpush1.msra.mxu0 0.0
            %1656 = vmatprep.subr.mxu0 0.0
            %1657 = vmatpush1.msra.mxu0 0.0
            %1658 = vmatprep.subr.mxu0 0.0
            %1659 = vmatpush1.msra.mxu0 0.0
            %1660 = vmatprep.subr.mxu0 0.0
            %1661 = vmatpush1.msra.mxu0 0.0
            %1662 = vmatprep.subr.mxu0 0.0
            %1663 = vmatpush1.msra.mxu0 0.0
            %1664 = vmatprep.subr.mxu0 0.0
            %1665 = vmatpush1.msra.mxu0 0.0
            %1666 = vmatprep.subr.mxu0 0.0
            %1667 = vmatpush1.msra.mxu0 0.0
            %1668 = vmatprep.subr.mxu0 0.0
            %1669 = vmatpush1.msra.mxu0 0.0
            %1670 = vmatprep.subr.mxu0 0.0
            %1671 = vmatpush1.msra.mxu0 0.0
            %1672 = vmatprep.subr.mxu0 0.0
            %1673 = vmatpush1.msra.mxu0 0.0
            %1674 = vmatprep.subr.mxu0 0.0
            %1675 = vmatpush1.msra.mxu0 0.0
            %1676 = vmatprep.subr.mxu0 0.0
            %1677 = vmatpush1.msra.mxu0 0.0
            %1678 = vmatprep.subr.mxu0 0.0
            %1679 = vmatpush1.msra.mxu0 0.0
            %1680 = vmatprep.subr.mxu0 0.0
            %1681 = vmatpush1.msra.mxu0 0.0
            %1682 = vmatprep.subr.mxu0 0.0
            %1683 = vmatpush1.msra.mxu0 0.0
            %1684 = vmatprep.subr.mxu0 0.0
            %1685 = vmatpush1.msra.mxu0 0.0
            %1686 = vmatprep.mubr.f32.mxu0 0.0
            %1687 = vmatmul.mubr.f32.gmra.mrb[0].mxu0 %v1620
            %v1688 = vpop.f32.mrb[0].mxu0
            %v1689 = vadd.f32 %v1617, %v1688
            %v1690 = vpop.f32.mrb[0].mxu0
            %1691 = vdwg.mxu0
            %vm1692 = vcmp.lt.s32.totalorder %v517, 0
            %v1693 = vsub.s32 0, %v517
            %v1694 = vsel %vm1692, %v1693, %v517
            %v1695 = vshrl.u32 %v1694, 2
            %v1696 = vand.u32 %v1694, 3
            %v1697 = vsub.s32 0, %v1696
            %v1698 = vsel %vm1692, %v1697, %v1696
            %vm1699 = vcmp.ne.s32.totalorder %v1698, 0
            %vm1700 = vcmp.lt.s32.totalorder %v1698, 0
            %vm1701 = vmand %vm1700, %vm1699
            %v1702 = vadd.s32 %v1698, 4
            %v1703 = vsel %vm1701, %v1702, %v1698
            %vm1704 = vcmp.eq.s32.totalorder %v1703, 0
            %vm1705 = vcmp.lt.s32.totalorder %v517, 9
            %vm1706 = vmand %vm1704, %vm1705
            %v1707 = vsel %vm1706, 1.0, 0.0
            %v1708 = vadd.f32 %v1689, %v1707
            %1709 = vst [vmem:[%s505] sm:$0x1] %v1708
          $region108: #{tpu_custom_call.1} parent=99 // pred_fallthru
            _
        $region100: #{tpu_custom_call.1} parent=55 // pred_fallthru
          _
        %s1710 = sand.u32 %s260, 1
        %s1711 = scalar_lea.sflag [#allocation6], %s1710
        %s1712 = sand.u32 %s260, 1
        %s1713 = scalar_lea.vmem [#allocation19], %s1712
        // Predicated region
        $region109: #{tpu_custom_call.1} parent=55 // pred_check
          %p1714 = pneg %p270
        $region110: #{tpu_custom_call.1} parent=55 // pred_check_branch
          %1716 = sbr.rel (%p1714) target = $region112
        $region111: #{tpu_custom_call.1} parent=55 // pred_region
          %s1718 = ssub.s32 16, 16
          %1719 = vsyncadd %s1711, %s1718
          %s1720 = smul.addr %s37, 16
          %s1721 = scalar_lea.hbm %s9, %s1720
          %s1723 = sshll.u32 %s1713, 4
          %s1724 = int_to_ptr.vmem [resolvable:$true] %s1723
          %1726 = dma.vmem_to_hbm [thread:$0]  %s1724, 16, %s1721, %s1711
        $region112: #{tpu_custom_call.1} parent=55 // pred_fallthru
          _
      $region56: #{tpu_custom_call.1} parent=5 // pred_fallthru
        _
      %p1727 = scmp.le.s32.totalorder 2, %s27
      // Predicated region
      $region113: #{tpu_custom_call.1} parent=5 // pred_check
        %p1728 = pneg %p1727
      $region114: #{tpu_custom_call.1} parent=5 // pred_check_branch
        %1730 = sbr.rel (%p1728) target = $region116
      $region115: #{tpu_custom_call.1} parent=5 // pred_region
        %s1731 = ssub.s32 %s27, 2
        // Predicated region
        $region117: #{tpu_custom_call.1} parent=115 // pred_check
          %p1732 = pneg %p276
        $region118: #{tpu_custom_call.1} parent=115 // pred_check_branch
          %1734 = sbr.rel (%p1732) target = $region120
        $region119: #{tpu_custom_call.1} parent=115 // pred_region
          %s1735 = sand.u32 %s261, 1
          %s1736 = scalar_lea.sflag [#allocation6], %s1735
          %s1737 = sand.u32 %s261, 1
          %s1738 = scalar_lea.vmem [#allocation19], %s1737
          %1739 = dma.done %s1736, 16
        $region120: #{tpu_custom_call.1} parent=115 // pred_fallthru
          _
      $region116: #{tpu_custom_call.1} parent=5 // pred_fallthru
        _
    $region6: #{tpu_custom_call.1} parent=1 // loop_footer
      %s31 = sadd.s32 1, %s27
    $region7: #{tpu_custom_call.1} parent=1 // loop_footer_branch
      %26 = sbr.rel target = $region3
    $region8: #{tpu_custom_call.1} parent=1 // loop_exit
      _
    %1740 = vsyncpa [#allocation5], 1
    %s1741 = scalar_lea.sflag [#allocation5], 1
    %1742 = vsyncpa %s1741, 1
    %1743 = vsyncpa [#allocation8], 1
    %s1744 = scalar_lea.sflag [#allocation8], 1
    %1745 = vsyncpa %s1744, 1
    %1746 = vsyncpa [#allocation11], 1
    %1747 = vsyncpa [#allocation14], 1
    %1748 = vsyncpa [#allocation17], 1
    %1749 = vsyncpa [#allocation6], 1
    %s1750 = scalar_lea.sflag [#allocation6], 1
    %1751 = vsyncpa %s1750, 1

</llo_original>
